<compile_context>
chip_gen: v7x
topology: tpu7x:2x2x1
jax: 0.10.0
libtpu: 0.0.40
codegen_flags: <defaults>
</compile_context>

<pallas_src>
import jax
import jax.numpy as jnp
from jax import lax
from jax.experimental import pallas as pl
from jax.experimental.pallas import tpu as pltpu

EPS = 1e-5


# ----------------------------- Pallas kernels -------------------------------

def _conv_tail(a, w_ref, b_ref, y_ref, s_ref, ss_ref, pad_ref, col_ref):
    """Shared conv body.

    a       : (H, W, Cr) f32   activation for this image (real channels only)
    w_ref   : (9*Cr, CP) bf16  im2col weight matrix
    b_ref   : (1, CP)   f32    conv bias (zeros on padded channels)
    y_ref   : (1, H, W, CP)    conv output block (channel-padded, lane-dense)
    s_ref   : (1, 1, CP)       per-image sum over H*W (BN partial stats)
    ss_ref  : (1, 1, CP)       per-image sum of squares
    pad_ref : (H+2, W+2, Cr)   VMEM scratch, zero-padded input slab
    col_ref : (H*W, 9*Cr)      VMEM scratch, im2col patch matrix
    """
    H, W, Cr = a.shape
    CP = y_ref.shape[3]

    # In-kernel "same" padding: zero the halo slab, write the interior.
    pad_ref[...] = jnp.zeros_like(pad_ref)
    pad_ref[1:H + 1, 1:W + 1, :] = a

    # im2col: one strided copy per tap into contiguous scratch (9 copies total).
    for ky in range(3):
        for kx in range(3):
            j = ky * 3 + kx
            col_ref[:, j * Cr:(j + 1) * Cr] = (
                pad_ref[ky:ky + H, kx:kx + W, :].reshape(H * W, Cr))

    # Single MXU matmul: bf16 operands, f32 accumulation.
    acc = jnp.dot(col_ref[...].astype(jnp.bfloat16), w_ref[...],
                  preferred_element_type=jnp.float32)          # (H*W, CP) f32
    acc = acc + b_ref[...]                                      # conv bias

    # Single-pass BN partial statistics (sum and sum-of-squares), f32.
    s_ref[0] = jnp.sum(acc, axis=0, keepdims=True)
    ss_ref[0] = jnp.sum(acc * acc, axis=0, keepdims=True)

    # Lane-dense store: last dim is the 128-padded channel count.
    y_ref[0] = acc.reshape(H, W, CP)


def _conv_kernel(x_ref, w_ref, b_ref, y_ref, s_ref, ss_ref, pad_ref, col_ref):
    """Conv only (first conv: raw input, no preceding BN/ReLU)."""
    _conv_tail(x_ref[0], w_ref, b_ref, y_ref, s_ref, ss_ref, pad_ref, col_ref)


def _bn_relu_conv_kernel(x_ref, scale_ref, shift_ref, w_ref, b_ref,
                         y_ref, s_ref, ss_ref, pad_ref, col_ref):
    """Fused BN(scale/shift)+ReLU applied on load, then conv (second conv)."""
    Cr = pad_ref.shape[2]
    a = jnp.maximum(x_ref[0] * scale_ref[0] + shift_ref[0], 0.0)   # f32 VPU math
    _conv_tail(a[:, :, :Cr], w_ref, b_ref, y_ref, s_ref, ss_ref, pad_ref, col_ref)


def _bn_relu_kernel(y_ref, scale_ref, shift_ref, o_ref):
    """Final BatchNorm (precomputed scale/shift) + ReLU apply."""
    o_ref[0] = jnp.maximum(y_ref[0] * scale_ref[0] + shift_ref[0], 0.0)


# ------------------------------ host wrappers --------------------------------

def conv3x3_bn_stats(x, w_mat, b_pad, scale=None, shift=None):
    """3x3 same-conv (+ optional fused pre-BN+ReLU) plus per-image BN stats.

    x     : (N, H, W, Cx) f32   (Cx = raw input channels or 128-padded channels)
    w_mat : (9*Cr, CP) bf16     (Cr = real input channels of this conv)
    b_pad : (1, CP) f32
    scale/shift : optional (1, Cx) f32 per-channel BN scale/shift of the input
    returns y (N,H,W,CP) f32, psum (N,1,CP) f32, psumsq (N,1,CP) f32
    """
    N, H, W, Cx = x.shape
    Cr = w_mat.shape[0] // 9
    CP = w_mat.shape[1]
    fused = scale is not None

    inputs = [x]
    in_specs = [pl.BlockSpec((1, H, W, Cx), lambda n: (n, 0, 0, 0))]
    if fused:
        inputs += [scale, shift]
        in_specs += [pl.BlockSpec((1, Cx), lambda n: (0, 0)),
                     pl.BlockSpec((1, Cx), lambda n: (0, 0))]
    inputs += [w_mat, b_pad]
    in_specs += [pl.BlockSpec((9 * Cr, CP), lambda n: (0, 0)),
                 pl.BlockSpec((1, CP), lambda n: (0, 0))]

    return pl.pallas_call(
        _bn_relu_conv_kernel if fused else _conv_kernel,
        grid=(N,),
        in_specs=in_specs,
        out_specs=(
            pl.BlockSpec((1, H, W, CP), lambda n: (n, 0, 0, 0)),
            pl.BlockSpec((1, 1, CP), lambda n: (n, 0, 0)),
            pl.BlockSpec((1, 1, CP), lambda n: (n, 0, 0)),
        ),
        out_shape=(
            jax.ShapeDtypeStruct((N, H, W, CP), jnp.float32),
            jax.ShapeDtypeStruct((N, 1, CP), jnp.float32),
            jax.ShapeDtypeStruct((N, 1, CP), jnp.float32),
        ),
        scratch_shapes=[
            pltpu.VMEM((H + 2, W + 2, Cr), jnp.float32),   # zero-padded input slab
            pltpu.VMEM((H * W, 9 * Cr), jnp.float32),      # im2col patch matrix
        ],
        compiler_params=pltpu.CompilerParams(
            dimension_semantics=("parallel",),             # batch axis -> megacore
            vmem_limit_bytes=32 * 1024 * 1024,
        ),
    )(*inputs)


def bn_relu_apply(y, scale, shift):
    N, H, W, C = y.shape
    return pl.pallas_call(
        _bn_relu_kernel,
        grid=(N,),
        in_specs=[pl.BlockSpec((1, H, W, C), lambda n: (n, 0, 0, 0)),
                  pl.BlockSpec((1, C), lambda n: (0, 0)),
                  pl.BlockSpec((1, C), lambda n: (0, 0))],
        out_specs=pl.BlockSpec((1, H, W, C), lambda n: (n, 0, 0, 0)),
        out_shape=jax.ShapeDtypeStruct((N, H, W, C), jnp.float32),
        compiler_params=pltpu.CompilerParams(
            dimension_semantics=("parallel",)),
    )(y, scale, shift)


def _bn_scale_shift(psum, psumsq, gamma_pad, beta_pad, count):
    """Tiny host-side reduction of the per-image partial sums into BN scale/shift."""
    total = jnp.sum(psum, axis=(0, 1))                    # (CP,)
    total_sq = jnp.sum(psumsq, axis=(0, 1))               # (CP,)
    mean = total / count
    var = jnp.maximum(total_sq / count - mean * mean, 0.0)   # biased variance
    scale = gamma_pad * lax.rsqrt(var + EPS)
    shift = beta_pad - mean * scale
    return scale[None, :], shift[None, :]                 # (1, CP) each


def conv_block_forward(x_nchw, params):
    """Forward pass of conv_block. Input/output are NCHW (PyTorch convention)."""
    N, _, H, W = x_nchw.shape
    ch_out = params["ch_out"]
    count = N * H * W

    x = jnp.transpose(x_nchw, (0, 2, 3, 1))               # NCHW -> NHWC (packed Cin)

    # conv1 (+ per-image BN1 partial stats)
    y1, s1, ss1 = conv3x3_bn_stats(x, params["w1m"], params["b1p"])
    scale1, shift1 = _bn_scale_shift(s1, ss1, params["g1p"], params["be1p"], count)

    # BN1 + ReLU fused into conv2's load path; conv2 (+ BN2 partial stats)
    y2, s2, ss2 = conv3x3_bn_stats(y1, params["w2m"], params["b2p"], scale1, shift1)
    scale2, shift2 = _bn_scale_shift(s2, ss2, params["g2p"], params["be2p"], count)

    # final BN2 + ReLU apply (lane-dense, parallel over batch)
    out = bn_relu_apply(y2, scale2, shift2)                # (N, H, W, CP)
    out = out[..., :ch_out]                                # drop channel padding
    return jnp.transpose(out, (0, 3, 1, 2))                # NHWC -> NCHW


def init_params(key, ch_in, ch_out):
    """Random parameters; conv weights in HWIO (PyTorch OIHW = transpose(3,2,0,1))."""
    ks = jax.random.split(key, 6)
    return {
        "w1": 0.1 * jax.random.normal(ks[0], (3, 3, ch_in, ch_out), jnp.float32),
        "b1": 0.1 * jax.random.normal(ks[1], (ch_out,), jnp.float32),
        "g1": 1.0 + 0.05 * jax.random.normal(ks[2], (ch_out,), jnp.float32),
        "be1": 0.05 * jax.random.normal(ks[3], (ch_out,), jnp.float32),
        "w2": 0.1 * jax.random.normal(ks[4], (3, 3, ch_out, ch_out), jnp.float32),
        "b2": 0.1 * jax.random.normal(ks[5], (ch_out,), jnp.float32),
        "g2": jnp.ones((ch_out,), jnp.float32),
        "be2": jnp.zeros((ch_out,), jnp.float32),
    }


def prepare_params(raw, ch_in, ch_out):
    """Pack weights for the kernels: im2col weight matrices (bf16, Cout padded to a
    multiple of 128 so conv outputs/stats are lane-dense) and 128-padded BN params."""
    cp = ((ch_out + 127) // 128) * 128

    def pad_c(v):                           # (ch_out,) -> (cp,), zero padded
        return jnp.pad(v, (0, cp - ch_out))

    w1m = raw["w1"].reshape(9 * ch_in, ch_out)
    w2m = raw["w2"].reshape(9 * ch_out, ch_out)
    return {
        "w1m": jnp.pad(w1m, ((0, 0), (0, cp - ch_out))).astype(jnp.bfloat16),
        "w2m": jnp.pad(w2m, ((0, 0), (0, cp - ch_out))).astype(jnp.bfloat16),
        "b1p": pad_c(raw["b1"]).reshape(1, cp),
        "b2p": pad_c(raw["b2"]).reshape(1, cp),
        "g1p": pad_c(raw["g1"]),
        "be1p": pad_c(raw["be1"]),
        "g2p": pad_c(raw["g2"]),
        "be2p": pad_c(raw["be2"]),
        "ch_out": ch_out,
    }


if __name__ == "__main__":
    key = jax.random.PRNGKey(0)
    k_x, k_p = jax.random.split(key)

    N, C_IN, C_OUT, H, W = 2, 4, 8, 16, 16
    x = jax.random.normal(k_x, (N, C_IN, H, W), jnp.float32)   # NCHW like PyTorch
    params = prepare_params(init_params(k_p, C_IN, C_OUT), C_IN, C_OUT)

    out = jax.block_until_ready(conv_block_forward(x, params))
    assert out.shape == (N, C_OUT, H, W)
    assert bool(jnp.all(out >= 0.0))   # final ReLU
    print("KERNEL_OK")
</pallas_src>

<mosaic_0001>
module attributes {stable_mosaic.version = 11 : i64} {
  func.func @_conv_kernel(%arg0: i32, %arg1: memref<1x16x16x4xf32, #tpu.memory_space<vmem>>, %arg2: memref<36x128xbf16, #tpu.memory_space<vmem>>, %arg3: memref<1x128xf32, #tpu.memory_space<vmem>>, %arg4: memref<1x16x16x128xf32, #tpu.memory_space<vmem>>, %arg5: memref<1x1x128xf32, #tpu.memory_space<vmem>>, %arg6: memref<1x1x128xf32, #tpu.memory_space<vmem>>, %arg7: memref<18x18x4xf32, #tpu.memory_space<vmem>>, %arg8: memref<256x36xf32, #tpu.memory_space<vmem>>) attributes {dimension_semantics = [#tpu.dimension_semantics<parallel>], iteration_bounds = array<i64: 2>, scalar_prefetch = 0 : i64, scratch_operands = 2 : i64, tpu.core_type = #tpu.core_type<tc>, window_params = [{transform_indices = @transform_0, window_bounds = array<i64: 1, 16, 16, 4>}, {pipeline_mode = #tpu.pipeline_mode<synchronous>, transform_indices = @transform_1, window_bounds = array<i64: 36, 128>}, {pipeline_mode = #tpu.pipeline_mode<synchronous>, transform_indices = @transform_2, window_bounds = array<i64: 1, 128>}, {transform_indices = @transform_3, window_bounds = array<i64: 1, 16, 16, 128>}, {transform_indices = @transform_4, window_bounds = array<i64: 1, 1, 128>}, {transform_indices = @transform_5, window_bounds = array<i64: 1, 1, 128>}]} {
    %c0 = arith.constant 0 : index
    %c0_0 = arith.constant 0 : index
    %c0_1 = arith.constant 0 : index
    %c0_2 = arith.constant 0 : index
    %0 = vector.load %arg1[%c0, %c0_0, %c0_1, %c0_2] : memref<1x16x16x4xf32, #tpu.memory_space<vmem>>, vector<1x16x16x4xf32>
    %1 = vector.shape_cast %0 : vector<1x16x16x4xf32> to vector<16x16x4xf32>
    %cst = arith.constant 0.000000e+00 : f32
    %2 = vector.broadcast %cst : f32 to vector<18x18x4xf32>
    %c0_3 = arith.constant 0 : index
    %c0_4 = arith.constant 0 : index
    %c0_5 = arith.constant 0 : index
    %3 = vector.load %arg7[%c0_3, %c0_4, %c0_5] : memref<18x18x4xf32, #tpu.memory_space<vmem>>, vector<18x18x4xf32>
    tpu.vector_store %arg7[%c0_3, %c0_4, %c0_5], %2 {strides = array<i32>} : memref<18x18x4xf32, #tpu.memory_space<vmem>>, vector<18x18x4xf32>,
    %c1 = arith.constant 1 : index
    %c1_6 = arith.constant 1 : index
    %c0_7 = arith.constant 0 : index
    %4 = vector.load %arg7[%c1, %c1_6, %c0_7] : memref<18x18x4xf32, #tpu.memory_space<vmem>>, vector<16x16x4xf32>
    tpu.vector_store %arg7[%c1, %c1_6, %c0_7], %1 {strides = array<i32>} : memref<18x18x4xf32, #tpu.memory_space<vmem>>, vector<16x16x4xf32>,
    %c0_8 = arith.constant 0 : index
    %c0_9 = arith.constant 0 : index
    %c0_10 = arith.constant 0 : index
    %5 = vector.load %arg7[%c0_8, %c0_9, %c0_10] : memref<18x18x4xf32, #tpu.memory_space<vmem>>, vector<16x16x4xf32>
    %6 = vector.shape_cast %5 : vector<16x16x4xf32> to vector<256x4xf32>
    %c0_11 = arith.constant 0 : index
    %c0_12 = arith.constant 0 : index
    %7 = vector.load %arg8[%c0_11, %c0_12] : memref<256x36xf32, #tpu.memory_space<vmem>>, vector<256x4xf32>
    tpu.vector_store %arg8[%c0_11, %c0_12], %6 {strides = array<i32>} : memref<256x36xf32, #tpu.memory_space<vmem>>, vector<256x4xf32>,
    %c0_13 = arith.constant 0 : index
    %c1_14 = arith.constant 1 : index
    %c0_15 = arith.constant 0 : index
    %8 = vector.load %arg7[%c0_13, %c1_14, %c0_15] : memref<18x18x4xf32, #tpu.memory_space<vmem>>, vector<16x16x4xf32>
    %9 = vector.shape_cast %8 : vector<16x16x4xf32> to vector<256x4xf32>
    %c0_16 = arith.constant 0 : index
    %c4 = arith.constant 4 : index
    %10 = vector.load %arg8[%c0_16, %c4] : memref<256x36xf32, #tpu.memory_space<vmem>>, vector<256x4xf32>
    tpu.vector_store %arg8[%c0_16, %c4], %9 {strides = array<i32>} : memref<256x36xf32, #tpu.memory_space<vmem>>, vector<256x4xf32>,
    %c0_17 = arith.constant 0 : index
    %c2 = arith.constant 2 : index
    %c0_18 = arith.constant 0 : index
    %11 = vector.load %arg7[%c0_17, %c2, %c0_18] : memref<18x18x4xf32, #tpu.memory_space<vmem>>, vector<16x16x4xf32>
    %12 = vector.shape_cast %11 : vector<16x16x4xf32> to vector<256x4xf32>
    %c0_19 = arith.constant 0 : index
    %c8 = arith.constant 8 : index
    %13 = vector.load %arg8[%c0_19, %c8] : memref<256x36xf32, #tpu.memory_space<vmem>>, vector<256x4xf32>
    tpu.vector_store %arg8[%c0_19, %c8], %12 {strides = array<i32>} : memref<256x36xf32, #tpu.memory_space<vmem>>, vector<256x4xf32>,
    %c1_20 = arith.constant 1 : index
    %c0_21 = arith.constant 0 : index
    %c0_22 = arith.constant 0 : index
    %14 = vector.load %arg7[%c1_20, %c0_21, %c0_22] : memref<18x18x4xf32, #tpu.memory_space<vmem>>, vector<16x16x4xf32>
    %15 = vector.shape_cast %14 : vector<16x16x4xf32> to vector<256x4xf32>
    %c0_23 = arith.constant 0 : index
    %c12 = arith.constant 12 : index
    %16 = vector.load %arg8[%c0_23, %c12] : memref<256x36xf32, #tpu.memory_space<vmem>>, vector<256x4xf32>
    tpu.vector_store %arg8[%c0_23, %c12], %15 {strides = array<i32>} : memref<256x36xf32, #tpu.memory_space<vmem>>, vector<256x4xf32>,
    %c1_24 = arith.constant 1 : index
    %c1_25 = arith.constant 1 : index
    %c0_26 = arith.constant 0 : index
    %17 = vector.load %arg7[%c1_24, %c1_25, %c0_26] : memref<18x18x4xf32, #tpu.memory_space<vmem>>, vector<16x16x4xf32>
    %18 = vector.shape_cast %17 : vector<16x16x4xf32> to vector<256x4xf32>
    %c0_27 = arith.constant 0 : index
    %c16 = arith.constant 16 : index
    %19 = vector.load %arg8[%c0_27, %c16] : memref<256x36xf32, #tpu.memory_space<vmem>>, vector<256x4xf32>
    tpu.vector_store %arg8[%c0_27, %c16], %18 {strides = array<i32>} : memref<256x36xf32, #tpu.memory_space<vmem>>, vector<256x4xf32>,
    %c1_28 = arith.constant 1 : index
    %c2_29 = arith.constant 2 : index
    %c0_30 = arith.constant 0 : index
    %20 = vector.load %arg7[%c1_28, %c2_29, %c0_30] : memref<18x18x4xf32, #tpu.memory_space<vmem>>, vector<16x16x4xf32>
    %21 = vector.shape_cast %20 : vector<16x16x4xf32> to vector<256x4xf32>
    %c0_31 = arith.constant 0 : index
    %c20 = arith.constant 20 : index
    %22 = vector.load %arg8[%c0_31, %c20] : memref<256x36xf32, #tpu.memory_space<vmem>>, vector<256x4xf32>
    tpu.vector_store %arg8[%c0_31, %c20], %21 {strides = array<i32>} : memref<256x36xf32, #tpu.memory_space<vmem>>, vector<256x4xf32>,
    %c2_32 = arith.constant 2 : index
    %c0_33 = arith.constant 0 : index
    %c0_34 = arith.constant 0 : index
    %23 = vector.load %arg7[%c2_32, %c0_33, %c0_34] : memref<18x18x4xf32, #tpu.memory_space<vmem>>, vector<16x16x4xf32>
    %24 = vector.shape_cast %23 : vector<16x16x4xf32> to vector<256x4xf32>
    %c0_35 = arith.constant 0 : index
    %c24 = arith.constant 24 : index
    %25 = vector.load %arg8[%c0_35, %c24] : memref<256x36xf32, #tpu.memory_space<vmem>>, vector<256x4xf32>
    tpu.vector_store %arg8[%c0_35, %c24], %24 {strides = array<i32>} : memref<256x36xf32, #tpu.memory_space<vmem>>, vector<256x4xf32>,
    %c2_36 = arith.constant 2 : index
    %c1_37 = arith.constant 1 : index
    %c0_38 = arith.constant 0 : index
    %26 = vector.load %arg7[%c2_36, %c1_37, %c0_38] : memref<18x18x4xf32, #tpu.memory_space<vmem>>, vector<16x16x4xf32>
    %27 = vector.shape_cast %26 : vector<16x16x4xf32> to vector<256x4xf32>
    %c0_39 = arith.constant 0 : index
    %c28 = arith.constant 28 : index
    %28 = vector.load %arg8[%c0_39, %c28] : memref<256x36xf32, #tpu.memory_space<vmem>>, vector<256x4xf32>
    tpu.vector_store %arg8[%c0_39, %c28], %27 {strides = array<i32>} : memref<256x36xf32, #tpu.memory_space<vmem>>, vector<256x4xf32>,
    %c2_40 = arith.constant 2 : index
    %c2_41 = arith.constant 2 : index
    %c0_42 = arith.constant 0 : index
    %29 = vector.load %arg7[%c2_40, %c2_41, %c0_42] : memref<18x18x4xf32, #tpu.memory_space<vmem>>, vector<16x16x4xf32>
    %30 = vector.shape_cast %29 : vector<16x16x4xf32> to vector<256x4xf32>
    %c0_43 = arith.constant 0 : index
    %c32 = arith.constant 32 : index
    %31 = vector.load %arg8[%c0_43, %c32] : memref<256x36xf32, #tpu.memory_space<vmem>>, vector<256x4xf32>
    tpu.vector_store %arg8[%c0_43, %c32], %30 {strides = array<i32>} : memref<256x36xf32, #tpu.memory_space<vmem>>, vector<256x4xf32>,
    %c0_44 = arith.constant 0 : index
    %c0_45 = arith.constant 0 : index
    %32 = vector.load %arg8[%c0_44, %c0_45] : memref<256x36xf32, #tpu.memory_space<vmem>>, vector<256x36xf32>
    %33 = arith.truncf %32 : vector<256x36xf32> to vector<256x36xbf16>
    %c0_46 = arith.constant 0 : index
    %c0_47 = arith.constant 0 : index
    %34 = vector.load %arg2[%c0_46, %c0_47] : memref<36x128xbf16, #tpu.memory_space<vmem>>, vector<36x128xbf16>
    %cst_48 = arith.constant dense<0.000000e+00> : vector<256x128xf32>
    %35 = tpu.matmul %33, %34, %cst_48 {dimension_numbers = #tpu.dot_dimension_numbers<[1], [0], [0], [1], [0, 0, 1, 1], [], []>} : vector<256x36xbf16>, vector<36x128xbf16>, vector<256x128xf32> -> vector<256x128xf32>
    %c0_49 = arith.constant 0 : index
    %c0_50 = arith.constant 0 : index
    %36 = vector.load %arg3[%c0_49, %c0_50] : memref<1x128xf32, #tpu.memory_space<vmem>>, vector<1x128xf32>
    %37 = vector.broadcast %36 : vector<1x128xf32> to vector<256x128xf32>
    %38 = arith.addf %35, %37 : vector<256x128xf32>
    %cst_51 = arith.constant dense<0.000000e+00> : vector<128xf32>
    %39 = vector.multi_reduction <add>, %38, %cst_51 [0] : vector<256x128xf32> to vector<128xf32>
    %40 = vector.shape_cast %39 : vector<128xf32> to vector<1x128xf32>
    %c0_52 = arith.constant 0 : index
    %c0_53 = arith.constant 0 : index
    %c0_54 = arith.constant 0 : index
    %41 = vector.load %arg5[%c0_52, %c0_53, %c0_54] : memref<1x1x128xf32, #tpu.memory_space<vmem>>, vector<1x1x128xf32>
    %42 = vector.shape_cast %41 : vector<1x1x128xf32> to vector<1x128xf32>
    %43 = vector.shape_cast %40 : vector<1x128xf32> to vector<1x1x128xf32>
    tpu.vector_store %arg5[%c0_52, %c0_53, %c0_54], %43 {strides = array<i32>} : memref<1x1x128xf32, #tpu.memory_space<vmem>>, vector<1x1x128xf32>,
    %44 = arith.mulf %38, %38 : vector<256x128xf32>
    %cst_55 = arith.constant dense<0.000000e+00> : vector<128xf32>
    %45 = vector.multi_reduction <add>, %44, %cst_55 [0] : vector<256x128xf32> to vector<128xf32>
    %46 = vector.shape_cast %45 : vector<128xf32> to vector<1x128xf32>
    %c0_56 = arith.constant 0 : index
    %c0_57 = arith.constant 0 : index
    %c0_58 = arith.constant 0 : index
    %47 = vector.load %arg6[%c0_56, %c0_57, %c0_58] : memref<1x1x128xf32, #tpu.memory_space<vmem>>, vector<1x1x128xf32>
    %48 = vector.shape_cast %47 : vector<1x1x128xf32> to vector<1x128xf32>
    %49 = vector.shape_cast %46 : vector<1x128xf32> to vector<1x1x128xf32>
    tpu.vector_store %arg6[%c0_56, %c0_57, %c0_58], %49 {strides = array<i32>} : memref<1x1x128xf32, #tpu.memory_space<vmem>>, vector<1x1x128xf32>,
    %50 = vector.shape_cast %38 : vector<256x128xf32> to vector<16x16x128xf32>
    %c0_59 = arith.constant 0 : index
    %c0_60 = arith.constant 0 : index
    %c0_61 = arith.constant 0 : index
    %c0_62 = arith.constant 0 : index
    %51 = vector.load %arg4[%c0_59, %c0_60, %c0_61, %c0_62] : memref<1x16x16x128xf32, #tpu.memory_space<vmem>>, vector<1x16x16x128xf32>
    %52 = vector.shape_cast %51 : vector<1x16x16x128xf32> to vector<16x16x128xf32>
    %53 = vector.shape_cast %50 : vector<16x16x128xf32> to vector<1x16x16x128xf32>
    tpu.vector_store %arg4[%c0_59, %c0_60, %c0_61, %c0_62], %53 {strides = array<i32>} : memref<1x16x16x128xf32, #tpu.memory_space<vmem>>, vector<1x16x16x128xf32>,
    return
  }
  func.func @transform_0(%arg0: i32) -> (i32, i32, i32, i32) {
    %c0_i32 = arith.constant 0 : i32
    %c0_i32_0 = arith.constant 0 : i32
    %c0_i32_1 = arith.constant 0 : i32
    %c0_i32_2 = arith.constant 0 : i32
    return %arg0, %c0_i32, %c0_i32_0, %c0_i32_1 : i32, i32, i32, i32
  }
  func.func @transform_1(%arg0: i32) -> (i32, i32) {
    %c0_i32 = arith.constant 0 : i32
    %c0_i32_0 = arith.constant 0 : i32
    %c0_i32_1 = arith.constant 0 : i32
    return %c0_i32, %c0_i32_0 : i32, i32
  }
  func.func @transform_2(%arg0: i32) -> (i32, i32) {
    %c0_i32 = arith.constant 0 : i32
    %c0_i32_0 = arith.constant 0 : i32
    %c0_i32_1 = arith.constant 0 : i32
    return %c0_i32, %c0_i32_0 : i32, i32
  }
  func.func @transform_3(%arg0: i32) -> (i32, i32, i32, i32) {
    %c0_i32 = arith.constant 0 : i32
    %c0_i32_0 = arith.constant 0 : i32
    %c0_i32_1 = arith.constant 0 : i32
    %c0_i32_2 = arith.constant 0 : i32
    return %arg0, %c0_i32, %c0_i32_0, %c0_i32_1 : i32, i32, i32, i32
  }
  func.func @transform_4(%arg0: i32) -> (i32, i32, i32) {
    %c0_i32 = arith.constant 0 : i32
    %c0_i32_0 = arith.constant 0 : i32
    %c0_i32_1 = arith.constant 0 : i32
    return %arg0, %c0_i32, %c0_i32_0 : i32, i32, i32
  }
  func.func @transform_5(%arg0: i32) -> (i32, i32, i32) {
    %c0_i32 = arith.constant 0 : i32
    %c0_i32_0 = arith.constant 0 : i32
    %c0_i32_1 = arith.constant 0 : i32
    return %arg0, %c0_i32, %c0_i32_0 : i32, i32, i32
  }
}

</mosaic_0001>

<llo_original>
// kernel: tpu_custom_call.1
$region0: #{tpu_custom_call.1}
  #allocation0 [shape = 'u32[]', space=smem, size = 0x4, offset = 0x4, fixed_abs, tag = 'smem constant byte address 0x4 - core index']
  #allocation1 [shape = 'u32[144,128]{1,0:T(1,128)}', space=vmem, size = 0x12000, scoped, tag = 'internal scratch']
  #allocation2 [shape = 'f32[18,18,4]{2,1,0:T(8,128)}', space=vmem, size = 0x36000, scoped, tag = 'scratch operand']
  #allocation3 [shape = 'f32[256,36]{1,0:T(8,128)}', space=vmem, size = 0x20000, scoped, tag = 'scratch operand']
  %s0 = inlined_call_operand.vmem [shape: f32[2,16,16,4], index: 0, kind: input, shape index: {}]
  %s1 = inlined_call_operand.vmem [shape: bf16[36,128], index: 1, kind: input, shape index: {}]
  %s2 = inlined_call_operand.vmem [shape: f32[1,128], index: 2, kind: input, shape index: {}]
  %s3 = inlined_call_operand.hbm [shape: f32[2,16,16,128], index: 3, kind: output, shape index: {0}]
  %s4 = inlined_call_operand.hbm [shape: f32[2,1,128], index: 4, kind: output, shape index: {1}]
  %s5 = inlined_call_operand.hbm [shape: f32[2,1,128], index: 5, kind: output, shape index: {2}]
  %6 = xla_tuple %s3, %s4, %s5
  %s7 = sld [smem:[#allocation0]]
  $region61: #{tpu_custom_call.1} parent=0
    _
  %s9 = ssub.s32 1, %s7
  %s10 = scalar_select 0, %s9, %s7
  $region1: #{tpu_custom_call.1} parent=0
    #allocation4 [shape = 'u8[262144]{0}', space=vmem, size = 0x40000, scoped, tag = 'output window, operand 0']
    #allocation5 [shape = 's32[2]{0}', space=sflag, size = 0x8, scoped, tag = 'scoped memory for tpu_custom_call.1']
    #allocation6 [shape = 'u8[1024]{0}', space=vmem, size = 0x400, scoped, tag = 'output window, operand 1']
    #allocation7 [shape = 's32[2]{0}', space=sflag, size = 0x8, scoped, tag = 'scoped memory for tpu_custom_call.1']
    #allocation8 [shape = 'u8[1024]{0}', space=vmem, size = 0x400, scoped, tag = 'output window, operand 2']
    %11 = vsyncpa [#allocation5], 0
    %s12 = scalar_lea.sflag [#allocation5], 1
    %13 = vsyncpa %s12, 0
    %14 = vsyncpa [#allocation7], 0
    %s15 = scalar_lea.sflag [#allocation7], 1
    %16 = vsyncpa %s15, 0
    loop: start=0, step=1, limit=4
    $region2: #{tpu_custom_call.1} parent=1 // loop_pre_header
      _
    $region3: #{tpu_custom_call.1} parent=1 // loop_header
      %s18 = sphi 0, %s22
      %p19 = scmp.ge.s32.totalorder %s18, 4
      %s28 = sphi 0, %s30
      %s31 = sphi 0, %s28
      %s32 = sphi 0, %s31
      %s48 = sphi 0, %s32
      %s52 = sphi 0, %s52
      %s54 = sphi 0, %s52
      %s55 = sphi 0, %s54
      %s69 = sphi 0, %s55
      %s73 = sphi 0, %s73
      %s75 = sphi 0, %s73
      %s76 = sphi 0, %s75
      %s90 = sphi 0, %s76
      %s96 = sphi 0, %s98
      %s99 = sphi 0, %s96
      %s100 = sphi 0, %s99
      %s116 = sphi 0, %s100
      %s122 = sphi 0, %s124
      %s125 = sphi 0, %s122
      %s126 = sphi 0, %s125
      %s142 = sphi 0, %s126
      %s148 = sphi 0, %s150
      %s151 = sphi 0, %s148
      %s152 = sphi 0, %s151
      %s168 = sphi 0, %s152
    $region4: #{tpu_custom_call.1} parent=1 // loop_header_branch
      %21 = sbr.rel (%p19) target = $region8
    $region5: #{tpu_custom_call.1} parent=1 // loop_body
      %s23 = ssub.s32 %s18, 1
      %s24 = ssub.s32 %s18, 2
      %s25 = sadd.s32 %s18, 1
      %s26 = ssub.s32 %s18, %s25
      %p27 = scmp.eq.s32.totalorder %s26, 0
      %s29 = sadd.s32 %s28, 1
      %s30 = scalar_select %p27, %s28, %s29
      %p33 = pneg %p27
      %p34 = scmp.eq.s32.totalorder %s18, 1
      %p35 = por %p33, %p34
      %p36 = scmp.ne.s32.totalorder %s28, %s31
      %p37 = scmp.eq.s32.totalorder %s18, 0
      %p38 = por %p36, %p37
      %p39 = scmp.ne.s32.totalorder %s28, %s31
      %p40 = scmp.eq.s32.totalorder %s23, 1
      %p41 = por %p39, %p40
      %p42 = scmp.ne.s32.totalorder %s31, %s32
      %p43 = scmp.eq.s32.totalorder %s23, 0
      %p44 = por %p42, %p43
      %p45 = scmp.ne.s32.totalorder %s31, %s32
      %p46 = scmp.eq.s32.totalorder %s24, 1
      %p47 = por %p45, %p46
      %p49 = scmp.ne.s32.totalorder %s32, %s48
      %p50 = scmp.eq.s32.totalorder %s24, 0
      %p51 = por %p49, %p50
      %s53 = sadd.s32 %s52, 1
      %p56 = scmp.eq.s32.totalorder %s18, 1
      %p57 = scmp.ne.s32.totalorder %s52, %s54
      %p58 = scmp.eq.s32.totalorder %s18, 0
      %p59 = por %p57, %p58
      %p60 = scmp.ne.s32.totalorder %s52, %s54
      %p61 = scmp.eq.s32.totalorder %s23, 1
      %p62 = por %p60, %p61
      %p63 = scmp.ne.s32.totalorder %s54, %s55
      %p64 = scmp.eq.s32.totalorder %s23, 0
      %p65 = por %p63, %p64
      %p66 = scmp.ne.s32.totalorder %s54, %s55
      %p67 = scmp.eq.s32.totalorder %s24, 1
      %p68 = por %p66, %p67
      %p70 = scmp.ne.s32.totalorder %s55, %s69
      %p71 = scmp.eq.s32.totalorder %s24, 0
      %p72 = por %p70, %p71
      %s74 = sadd.s32 %s73, 1
      %p77 = scmp.eq.s32.totalorder %s18, 1
      %p78 = scmp.ne.s32.totalorder %s73, %s75
      %p79 = scmp.eq.s32.totalorder %s18, 0
      %p80 = por %p78, %p79
      %p81 = scmp.ne.s32.totalorder %s73, %s75
      %p82 = scmp.eq.s32.totalorder %s23, 1
      %p83 = por %p81, %p82
      %p84 = scmp.ne.s32.totalorder %s75, %s76
      %p85 = scmp.eq.s32.totalorder %s23, 0
      %p86 = por %p84, %p85
      %p87 = scmp.ne.s32.totalorder %s75, %s76
      %p88 = scmp.eq.s32.totalorder %s24, 1
      %p89 = por %p87, %p88
      %p91 = scmp.ne.s32.totalorder %s76, %s90
      %p92 = scmp.eq.s32.totalorder %s24, 0
      %p93 = por %p91, %p92
      %s94 = ssub.s32 %s18, %s25
      %p95 = scmp.eq.s32.totalorder %s94, 0
      %s97 = sadd.s32 %s96, 1
      %s98 = scalar_select %p95, %s96, %s97
      %p101 = pneg %p95
      %p102 = scmp.eq.s32.totalorder %s18, 1
      %p103 = por %p101, %p102
      %p104 = scmp.ne.s32.totalorder %s96, %s99
      %p105 = scmp.eq.s32.totalorder %s18, 0
      %p106 = por %p104, %p105
      %p107 = scmp.ne.s32.totalorder %s96, %s99
      %p108 = scmp.eq.s32.totalorder %s23, 1
      %p109 = por %p107, %p108
      %p110 = scmp.ne.s32.totalorder %s99, %s100
      %p111 = scmp.eq.s32.totalorder %s23, 0
      %p112 = por %p110, %p111
      %p113 = scmp.ne.s32.totalorder %s99, %s100
      %p114 = scmp.eq.s32.totalorder %s24, 1
      %p115 = por %p113, %p114
      %p117 = scmp.ne.s32.totalorder %s100, %s116
      %p118 = scmp.eq.s32.totalorder %s24, 0
      %p119 = por %p117, %p118
      %s120 = ssub.s32 %s18, %s25
      %p121 = scmp.eq.s32.totalorder %s120, 0
      %s123 = sadd.s32 %s122, 1
      %s124 = scalar_select %p121, %s122, %s123
      %p127 = pneg %p121
      %p128 = scmp.eq.s32.totalorder %s18, 1
      %p129 = por %p127, %p128
      %p130 = scmp.ne.s32.totalorder %s122, %s125
      %p131 = scmp.eq.s32.totalorder %s18, 0
      %p132 = por %p130, %p131
      %p133 = scmp.ne.s32.totalorder %s122, %s125
      %p134 = scmp.eq.s32.totalorder %s23, 1
      %p135 = por %p133, %p134
      %p136 = scmp.ne.s32.totalorder %s125, %s126
      %p137 = scmp.eq.s32.totalorder %s23, 0
      %p138 = por %p136, %p137
      %p139 = scmp.ne.s32.totalorder %s125, %s126
      %p140 = scmp.eq.s32.totalorder %s24, 1
      %p141 = por %p139, %p140
      %p143 = scmp.ne.s32.totalorder %s126, %s142
      %p144 = scmp.eq.s32.totalorder %s24, 0
      %p145 = por %p143, %p144
      %s146 = ssub.s32 %s18, %s25
      %p147 = scmp.eq.s32.totalorder %s146, 0
      %s149 = sadd.s32 %s148, 1
      %s150 = scalar_select %p147, %s148, %s149
      %p153 = pneg %p147
      %p154 = scmp.eq.s32.totalorder %s18, 1
      %p155 = por %p153, %p154
      %p156 = scmp.ne.s32.totalorder %s148, %s151
      %p157 = scmp.eq.s32.totalorder %s18, 0
      %p158 = por %p156, %p157
      %p159 = scmp.ne.s32.totalorder %s148, %s151
      %p160 = scmp.eq.s32.totalorder %s23, 1
      %p161 = por %p159, %p160
      %p162 = scmp.ne.s32.totalorder %s151, %s152
      %p163 = scmp.eq.s32.totalorder %s23, 0
      %p164 = por %p162, %p163
      %p165 = scmp.ne.s32.totalorder %s151, %s152
      %p166 = scmp.eq.s32.totalorder %s24, 1
      %p167 = por %p165, %p166
      %p169 = scmp.ne.s32.totalorder %s152, %s168
      %p170 = scmp.eq.s32.totalorder %s24, 0
      %p171 = por %p169, %p170
      %p172 = scmp.le.s32.totalorder 1, %s18
      %p173 = scmp.lt.s32.totalorder %s18, 3
      %p174 = pnand %p172, %p173
      %p175 = pneg %p174
      // Predicated region
      $region9: #{tpu_custom_call.1} parent=5 // pred_check
        _
      $region10: #{tpu_custom_call.1} parent=5 // pred_check_branch
        %177 = sbr.rel (%p174) target = $region12
      $region11: #{tpu_custom_call.1} parent=5 // pred_region
        %s178 = ssub.s32 %s18, 1
        // Predicated region
        $region13: #{tpu_custom_call.1} parent=11 // pred_check
          %p179 = pneg %p65
        $region14: #{tpu_custom_call.1} parent=11 // pred_check_branch
          %181 = sbr.rel (%p179) target = $region16
        $region15: #{tpu_custom_call.1} parent=11 // pred_region
          _
        $region16: #{tpu_custom_call.1} parent=11 // pred_fallthru
          _
        // Predicated region
        $region17: #{tpu_custom_call.1} parent=11 // pred_check
          %p182 = pneg %p86
        $region18: #{tpu_custom_call.1} parent=11 // pred_check_branch
          %184 = sbr.rel (%p182) target = $region20
        $region19: #{tpu_custom_call.1} parent=11 // pred_region
          _
        $region20: #{tpu_custom_call.1} parent=11 // pred_fallthru
          _
      $region12: #{tpu_custom_call.1} parent=5 // pred_fallthru
        _
      %p185 = scmp.lt.s32.totalorder %s18, 2
      // Predicated region
      $region21: #{tpu_custom_call.1} parent=5 // pred_check
        %p186 = pneg %p185
      $region22: #{tpu_custom_call.1} parent=5 // pred_check_branch
        %188 = sbr.rel (%p186) target = $region24
      $region23: #{tpu_custom_call.1} parent=5 // pred_region
        // Predicated region
        $region25: #{tpu_custom_call.1} parent=23 // pred_check
          %p189 = pneg %p38
        $region26: #{tpu_custom_call.1} parent=23 // pred_check_branch
          %191 = sbr.rel (%p189) target = $region28
        $region27: #{tpu_custom_call.1} parent=23 // pred_region
          %p192 = scmp.lt.s32.totalorder %s18, 1
          %s193 = scalar_select %p192, %s18, 1
          %s194 = smul.addr %s193, 32
          %s195 = smul.addr %s194, 8
          %s196 = scalar_lea.vmem %s0, %s195
        $region28: #{tpu_custom_call.1} parent=23 // pred_fallthru
          _
      $region24: #{tpu_custom_call.1} parent=5 // pred_fallthru
        _
      %p197 = scmp.le.s32.totalorder 1, %s18
      %p198 = scmp.lt.s32.totalorder %s18, 3
      %p199 = pnand %p197, %p198
      %p200 = pneg %p199
      // Predicated region
      $region29: #{tpu_custom_call.1} parent=5 // pred_check
        _
      $region30: #{tpu_custom_call.1} parent=5 // pred_check_branch
        %202 = sbr.rel (%p199) target = $region32
      $region31: #{tpu_custom_call.1} parent=5 // pred_region
        %s203 = ssub.s32 %s18, 1
        %p204 = scmp.lt.s32.totalorder %s23, 1
        %s205 = scalar_select %p204, %s23, 1
        %s206 = smul.addr %s205, 32
        %s207 = smul.addr %s206, 8
        %s208 = scalar_lea.vmem %s0, %s207
        %p209 = pneg %p44
        %p210 = pneg %p41
        %p211 = pneg %p65
        %p212 = pneg %p62
        %p213 = pneg %p86
        %p214 = pneg %p83
        %p215 = pneg %p112
        %p216 = pneg %p109
        %s217 = sand.u32 %s99, 1
        %s218 = scalar_lea.sflag [#allocation5], %s217
        %s219 = sand.u32 %s99, 1
        %s220 = smul.addr %s219, 256
        %s221 = scalar_lea.vmem [#allocation4], %s220
        %p222 = pneg %p138
        %p223 = pneg %p135
        %s224 = sand.u32 %s23, 1
        %s225 = scalar_lea.sflag [#allocation7], %s224
        %s226 = sand.u32 %s125, 1
        %s227 = scalar_lea.vmem [#allocation6], %s226
        %p228 = pneg %p164
        %p229 = pneg %p161
        %s230 = sand.u32 %s23, 1
        %s231 = scalar_lea.sflag [#allocation7], %s230
        %s232 = sand.u32 %s151, 1
        %s233 = scalar_lea.vmem [#allocation8], %s232
        %p234 = scmp.lt.s32.totalorder %s23, 1
        %s235 = scalar_select %p234, %s23, 1
        %s236 = smul.addr %s235, 32
        %s237 = smul.addr %s236, 8
        %s238 = scalar_lea.vmem %s0, %s237
        %v240 = vld [vmem:[%s238] sm:$0xff]
        %v241 = vld [vmem:[%s238 + $0x8] sm:$0xff]
        %v242 = vld [vmem:[%s238 + $0x10] sm:$0xff]
        %v243 = vld [vmem:[%s238 + $0x18] sm:$0xff]
        %v244 = vld [vmem:[%s238 + $0x20] sm:$0xff]
        %v245 = vld [vmem:[%s238 + $0x28] sm:$0xff]
        %v246 = vld [vmem:[%s238 + $0x30] sm:$0xff]
        %v247 = vld [vmem:[%s238 + $0x38] sm:$0xff]
        %v248 = vld [vmem:[%s238 + $0x40] sm:$0xff]
        %v249 = vld [vmem:[%s238 + $0x48] sm:$0xff]
        %v250 = vld [vmem:[%s238 + $0x50] sm:$0xff]
        %v251 = vld [vmem:[%s238 + $0x58] sm:$0xff]
        %v252 = vld [vmem:[%s238 + $0x60] sm:$0xff]
        %v253 = vld [vmem:[%s238 + $0x68] sm:$0xff]
        %v254 = vld [vmem:[%s238 + $0x70] sm:$0xff]
        %v255 = vld [vmem:[%s238 + $0x78] sm:$0xff]
        %v256 = vld [vmem:[%s238 + $0x80] sm:$0xff]
        %v257 = vld [vmem:[%s238 + $0x88] sm:$0xff]
        %v258 = vld [vmem:[%s238 + $0x90] sm:$0xff]
        %v259 = vld [vmem:[%s238 + $0x98] sm:$0xff]
        %v260 = vld [vmem:[%s238 + $0xa0] sm:$0xff]
        %v261 = vld [vmem:[%s238 + $0xa8] sm:$0xff]
        %v262 = vld [vmem:[%s238 + $0xb0] sm:$0xff]
        %v263 = vld [vmem:[%s238 + $0xb8] sm:$0xff]
        %v264 = vld [vmem:[%s238 + $0xc0] sm:$0xff]
        %v265 = vld [vmem:[%s238 + $0xc8] sm:$0xff]
        %v266 = vld [vmem:[%s238 + $0xd0] sm:$0xff]
        %v267 = vld [vmem:[%s238 + $0xd8] sm:$0xff]
        %v268 = vld [vmem:[%s238 + $0xe0] sm:$0xff]
        %v269 = vld [vmem:[%s238 + $0xe8] sm:$0xff]
        %v270 = vld [vmem:[%s238 + $0xf0] sm:$0xff]
        %v271 = vld [vmem:[%s238 + $0xf8] sm:$0xff]
        %vm272 = vcmask 31744
        %273 = vst.msk [vmem:[#allocation2] sm:$0xff] %vm272, 0.0
        %274 = vst.msk [vmem:[#allocation2 + $0x8] sm:$0xff] %vm272, 0.0
        %vm275 = vcmask 25600
        %276 = vst.msk [vmem:[#allocation2 + $0x10] sm:$0x3] %vm275, 0.0
        %277 = vst.msk [vmem:[#allocation2 + $0x18] sm:$0xff] %vm272, 0.0
        %278 = vst.msk [vmem:[#allocation2 + $0x20] sm:$0xff] %vm272, 0.0
        %279 = vst.msk [vmem:[#allocation2 + $0x28] sm:$0x3] %vm275, 0.0
        %280 = vst.msk [vmem:[#allocation2 + $0x30] sm:$0xff] %vm272, 0.0
        %281 = vst.msk [vmem:[#allocation2 + $0x38] sm:$0xff] %vm272, 0.0
        %282 = vst.msk [vmem:[#allocation2 + $0x40] sm:$0x3] %vm275, 0.0
        %283 = vst.msk [vmem:[#allocation2 + $0x48] sm:$0xff] %vm272, 0.0
        %284 = vst.msk [vmem:[#allocation2 + $0x50] sm:$0xff] %vm272, 0.0
        %285 = vst.msk [vmem:[#allocation2 + $0x58] sm:$0x3] %vm275, 0.0
        %286 = vst.msk [vmem:[#allocation2 + $0x60] sm:$0xff] %vm272, 0.0
        %287 = vst.msk [vmem:[#allocation2 + $0x68] sm:$0xff] %vm272, 0.0
        %288 = vst.msk [vmem:[#allocation2 + $0x70] sm:$0x3] %vm275, 0.0
        %289 = vst.msk [vmem:[#allocation2 + $0x78] sm:$0xff] %vm272, 0.0
        %290 = vst.msk [vmem:[#allocation2 + $0x80] sm:$0xff] %vm272, 0.0
        %291 = vst.msk [vmem:[#allocation2 + $0x88] sm:$0x3] %vm275, 0.0
        %292 = vst.msk [vmem:[#allocation2 + $0x90] sm:$0xff] %vm272, 0.0
        %293 = vst.msk [vmem:[#allocation2 + $0x98] sm:$0xff] %vm272, 0.0
        %294 = vst.msk [vmem:[#allocation2 + $0xa0] sm:$0x3] %vm275, 0.0
        %295 = vst.msk [vmem:[#allocation2 + $0xa8] sm:$0xff] %vm272, 0.0
        %296 = vst.msk [vmem:[#allocation2 + $0xb0] sm:$0xff] %vm272, 0.0
        %297 = vst.msk [vmem:[#allocation2 + $0xb8] sm:$0x3] %vm275, 0.0
        %298 = vst.msk [vmem:[#allocation2 + $0xc0] sm:$0xff] %vm272, 0.0
        %299 = vst.msk [vmem:[#allocation2 + $0xc8] sm:$0xff] %vm272, 0.0
        %300 = vst.msk [vmem:[#allocation2 + $0xd0] sm:$0x3] %vm275, 0.0
        %301 = vst.msk [vmem:[#allocation2 + $0xd8] sm:$0xff] %vm272, 0.0
        %302 = vst.msk [vmem:[#allocation2 + $0xe0] sm:$0xff] %vm272, 0.0
        %303 = vst.msk [vmem:[#allocation2 + $0xe8] sm:$0x3] %vm275, 0.0
        %304 = vst.msk [vmem:[#allocation2 + $0xf0] sm:$0xff] %vm272, 0.0
        %305 = vst.msk [vmem:[#allocation2 + $0xf8] sm:$0xff] %vm272, 0.0
        %306 = vst.msk [vmem:[#allocation2 + $0x100] sm:$0x3] %vm275, 0.0
        %307 = vst.msk [vmem:[#allocation2 + $0x108] sm:$0xff] %vm272, 0.0
        %308 = vst.msk [vmem:[#allocation2 + $0x110] sm:$0xff] %vm272, 0.0
        %309 = vst.msk [vmem:[#allocation2 + $0x118] sm:$0x3] %vm275, 0.0
        %310 = vst.msk [vmem:[#allocation2 + $0x120] sm:$0xff] %vm272, 0.0
        %311 = vst.msk [vmem:[#allocation2 + $0x128] sm:$0xff] %vm272, 0.0
        %312 = vst.msk [vmem:[#allocation2 + $0x130] sm:$0x3] %vm275, 0.0
        %313 = vst.msk [vmem:[#allocation2 + $0x138] sm:$0xff] %vm272, 0.0
        %314 = vst.msk [vmem:[#allocation2 + $0x140] sm:$0xff] %vm272, 0.0
        %315 = vst.msk [vmem:[#allocation2 + $0x148] sm:$0x3] %vm275, 0.0
        %316 = vst.msk [vmem:[#allocation2 + $0x150] sm:$0xff] %vm272, 0.0
        %317 = vst.msk [vmem:[#allocation2 + $0x158] sm:$0xff] %vm272, 0.0
        %318 = vst.msk [vmem:[#allocation2 + $0x160] sm:$0x3] %vm275, 0.0
        %319 = vst.msk [vmem:[#allocation2 + $0x168] sm:$0xff] %vm272, 0.0
        %320 = vst.msk [vmem:[#allocation2 + $0x170] sm:$0xff] %vm272, 0.0
        %321 = vst.msk [vmem:[#allocation2 + $0x178] sm:$0x3] %vm275, 0.0
        %322 = vst.msk [vmem:[#allocation2 + $0x180] sm:$0xff] %vm272, 0.0
        %323 = vst.msk [vmem:[#allocation2 + $0x188] sm:$0xff] %vm272, 0.0
        %324 = vst.msk [vmem:[#allocation2 + $0x190] sm:$0x3] %vm275, 0.0
        %325 = vst.msk [vmem:[#allocation2 + $0x198] sm:$0xff] %vm272, 0.0
        %326 = vst.msk [vmem:[#allocation2 + $0x1a0] sm:$0xff] %vm272, 0.0
        %327 = vst.msk [vmem:[#allocation2 + $0x1a8] sm:$0x3] %vm275, 0.0
        %s328 = scalar_lea.vmem [#allocation2], 24
        %329 = vst.msk [vmem:[%s328 + $0x1] sm:$0xff] %vm272, %v240
        %330 = vst.msk [vmem:[%s328 + $0x9] sm:$0xff] %vm272, %v241
        %331 = vst.msk [vmem:[%s328 + $0x19] sm:$0xff] %vm272, %v242
        %332 = vst.msk [vmem:[%s328 + $0x21] sm:$0xff] %vm272, %v243
        %333 = vst.msk [vmem:[%s328 + $0x31] sm:$0xff] %vm272, %v244
        %334 = vst.msk [vmem:[%s328 + $0x39] sm:$0xff] %vm272, %v245
        %335 = vst.msk [vmem:[%s328 + $0x49] sm:$0xff] %vm272, %v246
        %336 = vst.msk [vmem:[%s328 + $0x51] sm:$0xff] %vm272, %v247
        %337 = vst.msk [vmem:[%s328 + $0x61] sm:$0xff] %vm272, %v248
        %338 = vst.msk [vmem:[%s328 + $0x69] sm:$0xff] %vm272, %v249
        %339 = vst.msk [vmem:[%s328 + $0x79] sm:$0xff] %vm272, %v250
        %340 = vst.msk [vmem:[%s328 + $0x81] sm:$0xff] %vm272, %v251
        %341 = vst.msk [vmem:[%s328 + $0x91] sm:$0xff] %vm272, %v252
        %342 = vst.msk [vmem:[%s328 + $0x99] sm:$0xff] %vm272, %v253
        %343 = vst.msk [vmem:[%s328 + $0xa9] sm:$0xff] %vm272, %v254
        %344 = vst.msk [vmem:[%s328 + $0xb1] sm:$0xff] %vm272, %v255
        %345 = vst.msk [vmem:[%s328 + $0xc1] sm:$0xff] %vm272, %v256
        %346 = vst.msk [vmem:[%s328 + $0xc9] sm:$0xff] %vm272, %v257
        %347 = vst.msk [vmem:[%s328 + $0xd9] sm:$0xff] %vm272, %v258
        %348 = vst.msk [vmem:[%s328 + $0xe1] sm:$0xff] %vm272, %v259
        %349 = vst.msk [vmem:[%s328 + $0xf1] sm:$0xff] %vm272, %v260
        %350 = vst.msk [vmem:[%s328 + $0xf9] sm:$0xff] %vm272, %v261
        %351 = vst.msk [vmem:[%s328 + $0x109] sm:$0xff] %vm272, %v262
        %352 = vst.msk [vmem:[%s328 + $0x111] sm:$0xff] %vm272, %v263
        %353 = vst.msk [vmem:[%s328 + $0x121] sm:$0xff] %vm272, %v264
        %354 = vst.msk [vmem:[%s328 + $0x129] sm:$0xff] %vm272, %v265
        %355 = vst.msk [vmem:[%s328 + $0x139] sm:$0xff] %vm272, %v266
        %356 = vst.msk [vmem:[%s328 + $0x141] sm:$0xff] %vm272, %v267
        %357 = vst.msk [vmem:[%s328 + $0x151] sm:$0xff] %vm272, %v268
        %358 = vst.msk [vmem:[%s328 + $0x159] sm:$0xff] %vm272, %v269
        %359 = vst.msk [vmem:[%s328 + $0x169] sm:$0xff] %vm272, %v270
        %360 = vst.msk [vmem:[%s328 + $0x171] sm:$0xff] %vm272, %v271
        %v361 = vld [vmem:[#allocation2] sm:$0xff]
        %v362 = vld [vmem:[#allocation2 + $0x8] sm:$0xff]
        %v363 = vld [vmem:[#allocation2 + $0x18] sm:$0xff]
        %v364 = vld [vmem:[#allocation2 + $0x20] sm:$0xff]
        %v365 = vld [vmem:[#allocation2 + $0x30] sm:$0xff]
        %v366 = vld [vmem:[#allocation2 + $0x38] sm:$0xff]
        %v367 = vld [vmem:[#allocation2 + $0x48] sm:$0xff]
        %v368 = vld [vmem:[#allocation2 + $0x50] sm:$0xff]
        %v369 = vld [vmem:[#allocation2 + $0x60] sm:$0xff]
        %v370 = vld [vmem:[#allocation2 + $0x68] sm:$0xff]
        %v371 = vld [vmem:[#allocation2 + $0x78] sm:$0xff]
        %v372 = vld [vmem:[#allocation2 + $0x80] sm:$0xff]
        %v373 = vld [vmem:[#allocation2 + $0x90] sm:$0xff]
        %v374 = vld [vmem:[#allocation2 + $0x98] sm:$0xff]
        %v375 = vld [vmem:[#allocation2 + $0xa8] sm:$0xff]
        %v376 = vld [vmem:[#allocation2 + $0xb0] sm:$0xff]
        %v377 = vld [vmem:[#allocation2 + $0xc0] sm:$0xff]
        %v378 = vld [vmem:[#allocation2 + $0xc8] sm:$0xff]
        %v379 = vld [vmem:[#allocation2 + $0xd8] sm:$0xff]
        %v380 = vld [vmem:[#allocation2 + $0xe0] sm:$0xff]
        %v381 = vld [vmem:[#allocation2 + $0xf0] sm:$0xff]
        %v382 = vld [vmem:[#allocation2 + $0xf8] sm:$0xff]
        %v383 = vld [vmem:[#allocation2 + $0x108] sm:$0xff]
        %v384 = vld [vmem:[#allocation2 + $0x110] sm:$0xff]
        %v385 = vld [vmem:[#allocation2 + $0x120] sm:$0xff]
        %v386 = vld [vmem:[#allocation2 + $0x128] sm:$0xff]
        %v387 = vld [vmem:[#allocation2 + $0x138] sm:$0xff]
        %v388 = vld [vmem:[#allocation2 + $0x140] sm:$0xff]
        %v389 = vld [vmem:[#allocation2 + $0x150] sm:$0xff]
        %v390 = vld [vmem:[#allocation2 + $0x158] sm:$0xff]
        %v391 = vld [vmem:[#allocation2 + $0x168] sm:$0xff]
        %v392 = vld [vmem:[#allocation2 + $0x170] sm:$0xff]
        %393 = vst.msk [vmem:[#allocation3] sm:$0xff] %vm272, %v361
        %394 = vst.msk [vmem:[#allocation3 + $0x8] sm:$0xff] %vm272, %v362
        %395 = vst.msk [vmem:[#allocation3 + $0x10] sm:$0xff] %vm272, %v363
        %396 = vst.msk [vmem:[#allocation3 + $0x18] sm:$0xff] %vm272, %v364
        %397 = vst.msk [vmem:[#allocation3 + $0x20] sm:$0xff] %vm272, %v365
        %398 = vst.msk [vmem:[#allocation3 + $0x28] sm:$0xff] %vm272, %v366
        %399 = vst.msk [vmem:[#allocation3 + $0x30] sm:$0xff] %vm272, %v367
        %400 = vst.msk [vmem:[#allocation3 + $0x38] sm:$0xff] %vm272, %v368
        %401 = vst.msk [vmem:[#allocation3 + $0x40] sm:$0xff] %vm272, %v369
        %402 = vst.msk [vmem:[#allocation3 + $0x48] sm:$0xff] %vm272, %v370
        %403 = vst.msk [vmem:[#allocation3 + $0x50] sm:$0xff] %vm272, %v371
        %404 = vst.msk [vmem:[#allocation3 + $0x58] sm:$0xff] %vm272, %v372
        %405 = vst.msk [vmem:[#allocation3 + $0x60] sm:$0xff] %vm272, %v373
        %406 = vst.msk [vmem:[#allocation3 + $0x68] sm:$0xff] %vm272, %v374
        %407 = vst.msk [vmem:[#allocation3 + $0x70] sm:$0xff] %vm272, %v375
        %408 = vst.msk [vmem:[#allocation3 + $0x78] sm:$0xff] %vm272, %v376
        %409 = vst.msk [vmem:[#allocation3 + $0x80] sm:$0xff] %vm272, %v377
        %410 = vst.msk [vmem:[#allocation3 + $0x88] sm:$0xff] %vm272, %v378
        %411 = vst.msk [vmem:[#allocation3 + $0x90] sm:$0xff] %vm272, %v379
        %412 = vst.msk [vmem:[#allocation3 + $0x98] sm:$0xff] %vm272, %v380
        %413 = vst.msk [vmem:[#allocation3 + $0xa0] sm:$0xff] %vm272, %v381
        %414 = vst.msk [vmem:[#allocation3 + $0xa8] sm:$0xff] %vm272, %v382
        %415 = vst.msk [vmem:[#allocation3 + $0xb0] sm:$0xff] %vm272, %v383
        %416 = vst.msk [vmem:[#allocation3 + $0xb8] sm:$0xff] %vm272, %v384
        %417 = vst.msk [vmem:[#allocation3 + $0xc0] sm:$0xff] %vm272, %v385
        %418 = vst.msk [vmem:[#allocation3 + $0xc8] sm:$0xff] %vm272, %v386
        %419 = vst.msk [vmem:[#allocation3 + $0xd0] sm:$0xff] %vm272, %v387
        %420 = vst.msk [vmem:[#allocation3 + $0xd8] sm:$0xff] %vm272, %v388
        %421 = vst.msk [vmem:[#allocation3 + $0xe0] sm:$0xff] %vm272, %v389
        %422 = vst.msk [vmem:[#allocation3 + $0xe8] sm:$0xff] %vm272, %v390
        %423 = vst.msk [vmem:[#allocation3 + $0xf0] sm:$0xff] %vm272, %v391
        %424 = vst.msk [vmem:[#allocation3 + $0xf8] sm:$0xff] %vm272, %v392
        %v425 = vld [vmem:[#allocation2 + $0x1] sm:$0xff]
        %v426 = vld [vmem:[#allocation2 + $0x9] sm:$0xff]
        %v427 = vld [vmem:[#allocation2 + $0x19] sm:$0xff]
        %v428 = vld [vmem:[#allocation2 + $0x21] sm:$0xff]
        %v429 = vld [vmem:[#allocation2 + $0x31] sm:$0xff]
        %v430 = vld [vmem:[#allocation2 + $0x39] sm:$0xff]
        %v431 = vld [vmem:[#allocation2 + $0x49] sm:$0xff]
        %v432 = vld [vmem:[#allocation2 + $0x51] sm:$0xff]
        %v433 = vld [vmem:[#allocation2 + $0x61] sm:$0xff]
        %v434 = vld [vmem:[#allocation2 + $0x69] sm:$0xff]
        %v435 = vld [vmem:[#allocation2 + $0x79] sm:$0xff]
        %v436 = vld [vmem:[#allocation2 + $0x81] sm:$0xff]
        %v437 = vld [vmem:[#allocation2 + $0x91] sm:$0xff]
        %v438 = vld [vmem:[#allocation2 + $0x99] sm:$0xff]
        %v439 = vld [vmem:[#allocation2 + $0xa9] sm:$0xff]
        %v440 = vld [vmem:[#allocation2 + $0xb1] sm:$0xff]
        %v441 = vld [vmem:[#allocation2 + $0xc1] sm:$0xff]
        %v442 = vld [vmem:[#allocation2 + $0xc9] sm:$0xff]
        %v443 = vld [vmem:[#allocation2 + $0xd9] sm:$0xff]
        %v444 = vld [vmem:[#allocation2 + $0xe1] sm:$0xff]
        %v445 = vld [vmem:[#allocation2 + $0xf1] sm:$0xff]
        %v446 = vld [vmem:[#allocation2 + $0xf9] sm:$0xff]
        %v447 = vld [vmem:[#allocation2 + $0x109] sm:$0xff]
        %v448 = vld [vmem:[#allocation2 + $0x111] sm:$0xff]
        %v449 = vld [vmem:[#allocation2 + $0x121] sm:$0xff]
        %v450 = vld [vmem:[#allocation2 + $0x129] sm:$0xff]
        %v451 = vld [vmem:[#allocation2 + $0x139] sm:$0xff]
        %v452 = vld [vmem:[#allocation2 + $0x141] sm:$0xff]
        %v453 = vld [vmem:[#allocation2 + $0x151] sm:$0xff]
        %v454 = vld [vmem:[#allocation2 + $0x159] sm:$0xff]
        %v455 = vld [vmem:[#allocation2 + $0x169] sm:$0xff]
        %v456 = vld [vmem:[#allocation2 + $0x171] sm:$0xff]
        %489 = vrot.lane.b32.xlu0 %v425, 4
        %v490 = vpop.permute.xlu0 %489
        %491 = vrot.lane.b32.xlu0 %v426, 4
        %v492 = vpop.permute.xlu0 %491
        %493 = vrot.lane.b32.xlu0 %v427, 4
        %v494 = vpop.permute.xlu0 %493
        %495 = vrot.lane.b32.xlu0 %v428, 4
        %v496 = vpop.permute.xlu0 %495
        %497 = vrot.lane.b32.xlu0 %v429, 4
        %v498 = vpop.permute.xlu0 %497
        %499 = vrot.lane.b32.xlu0 %v430, 4
        %v500 = vpop.permute.xlu0 %499
        %501 = vrot.lane.b32.xlu0 %v431, 4
        %v502 = vpop.permute.xlu0 %501
        %503 = vrot.lane.b32.xlu0 %v432, 4
        %v504 = vpop.permute.xlu0 %503
        %505 = vrot.lane.b32.xlu0 %v433, 4
        %v506 = vpop.permute.xlu0 %505
        %507 = vrot.lane.b32.xlu0 %v434, 4
        %v508 = vpop.permute.xlu0 %507
        %509 = vrot.lane.b32.xlu0 %v435, 4
        %v510 = vpop.permute.xlu0 %509
        %511 = vrot.lane.b32.xlu0 %v436, 4
        %v512 = vpop.permute.xlu0 %511
        %513 = vrot.lane.b32.xlu0 %v437, 4
        %v514 = vpop.permute.xlu0 %513
        %515 = vrot.lane.b32.xlu0 %v438, 4
        %v516 = vpop.permute.xlu0 %515
        %517 = vrot.lane.b32.xlu0 %v439, 4
        %v518 = vpop.permute.xlu0 %517
        %519 = vrot.lane.b32.xlu0 %v440, 4
        %v520 = vpop.permute.xlu0 %519
        %521 = vrot.lane.b32.xlu0 %v441, 4
        %v522 = vpop.permute.xlu0 %521
        %523 = vrot.lane.b32.xlu0 %v442, 4
        %v524 = vpop.permute.xlu0 %523
        %525 = vrot.lane.b32.xlu0 %v443, 4
        %v526 = vpop.permute.xlu0 %525
        %527 = vrot.lane.b32.xlu0 %v444, 4
        %v528 = vpop.permute.xlu0 %527
        %529 = vrot.lane.b32.xlu0 %v445, 4
        %v530 = vpop.permute.xlu0 %529
        %531 = vrot.lane.b32.xlu0 %v446, 4
        %v532 = vpop.permute.xlu0 %531
        %533 = vrot.lane.b32.xlu0 %v447, 4
        %v534 = vpop.permute.xlu0 %533
        %535 = vrot.lane.b32.xlu0 %v448, 4
        %v536 = vpop.permute.xlu0 %535
        %537 = vrot.lane.b32.xlu0 %v449, 4
        %v538 = vpop.permute.xlu0 %537
        %539 = vrot.lane.b32.xlu0 %v450, 4
        %v540 = vpop.permute.xlu0 %539
        %541 = vrot.lane.b32.xlu0 %v451, 4
        %v542 = vpop.permute.xlu0 %541
        %543 = vrot.lane.b32.xlu0 %v452, 4
        %v544 = vpop.permute.xlu0 %543
        %545 = vrot.lane.b32.xlu0 %v453, 4
        %v546 = vpop.permute.xlu0 %545
        %547 = vrot.lane.b32.xlu0 %v454, 4
        %v548 = vpop.permute.xlu0 %547
        %549 = vrot.lane.b32.xlu0 %v455, 4
        %v550 = vpop.permute.xlu0 %549
        %551 = vrot.lane.b32.xlu0 %v456, 4
        %v552 = vpop.permute.xlu0 %551
        %vm585 = vcmask 64544
        %586 = vst.msk [vmem:[#allocation3] sm:$0xff] %vm585, %v490
        %587 = vst.msk [vmem:[#allocation3 + $0x8] sm:$0xff] %vm585, %v492
        %588 = vst.msk [vmem:[#allocation3 + $0x10] sm:$0xff] %vm585, %v494
        %589 = vst.msk [vmem:[#allocation3 + $0x18] sm:$0xff] %vm585, %v496
        %590 = vst.msk [vmem:[#allocation3 + $0x20] sm:$0xff] %vm585, %v498
        %591 = vst.msk [vmem:[#allocation3 + $0x28] sm:$0xff] %vm585, %v500
        %592 = vst.msk [vmem:[#allocation3 + $0x30] sm:$0xff] %vm585, %v502
        %593 = vst.msk [vmem:[#allocation3 + $0x38] sm:$0xff] %vm585, %v504
        %594 = vst.msk [vmem:[#allocation3 + $0x40] sm:$0xff] %vm585, %v506
        %595 = vst.msk [vmem:[#allocation3 + $0x48] sm:$0xff] %vm585, %v508
        %596 = vst.msk [vmem:[#allocation3 + $0x50] sm:$0xff] %vm585, %v510
        %597 = vst.msk [vmem:[#allocation3 + $0x58] sm:$0xff] %vm585, %v512
        %598 = vst.msk [vmem:[#allocation3 + $0x60] sm:$0xff] %vm585, %v514
        %599 = vst.msk [vmem:[#allocation3 + $0x68] sm:$0xff] %vm585, %v516
        %600 = vst.msk [vmem:[#allocation3 + $0x70] sm:$0xff] %vm585, %v518
        %601 = vst.msk [vmem:[#allocation3 + $0x78] sm:$0xff] %vm585, %v520
        %602 = vst.msk [vmem:[#allocation3 + $0x80] sm:$0xff] %vm585, %v522
        %603 = vst.msk [vmem:[#allocation3 + $0x88] sm:$0xff] %vm585, %v524
        %604 = vst.msk [vmem:[#allocation3 + $0x90] sm:$0xff] %vm585, %v526
        %605 = vst.msk [vmem:[#allocation3 + $0x98] sm:$0xff] %vm585, %v528
        %606 = vst.msk [vmem:[#allocation3 + $0xa0] sm:$0xff] %vm585, %v530
        %607 = vst.msk [vmem:[#allocation3 + $0xa8] sm:$0xff] %vm585, %v532
        %608 = vst.msk [vmem:[#allocation3 + $0xb0] sm:$0xff] %vm585, %v534
        %609 = vst.msk [vmem:[#allocation3 + $0xb8] sm:$0xff] %vm585, %v536
        %610 = vst.msk [vmem:[#allocation3 + $0xc0] sm:$0xff] %vm585, %v538
        %611 = vst.msk [vmem:[#allocation3 + $0xc8] sm:$0xff] %vm585, %v540
        %612 = vst.msk [vmem:[#allocation3 + $0xd0] sm:$0xff] %vm585, %v542
        %613 = vst.msk [vmem:[#allocation3 + $0xd8] sm:$0xff] %vm585, %v544
        %614 = vst.msk [vmem:[#allocation3 + $0xe0] sm:$0xff] %vm585, %v546
        %615 = vst.msk [vmem:[#allocation3 + $0xe8] sm:$0xff] %vm585, %v548
        %616 = vst.msk [vmem:[#allocation3 + $0xf0] sm:$0xff] %vm585, %v550
        %617 = vst.msk [vmem:[#allocation3 + $0xf8] sm:$0xff] %vm585, %v552
        %v618 = vld [vmem:[#allocation2 + $0x2] sm:$0xff]
        %v619 = vld [vmem:[#allocation2 + $0xa] sm:$0xff]
        %v620 = vld [vmem:[#allocation2 + $0x1a] sm:$0xff]
        %v621 = vld [vmem:[#allocation2 + $0x22] sm:$0xff]
        %v622 = vld [vmem:[#allocation2 + $0x32] sm:$0xff]
        %v623 = vld [vmem:[#allocation2 + $0x3a] sm:$0xff]
        %v624 = vld [vmem:[#allocation2 + $0x4a] sm:$0xff]
        %v625 = vld [vmem:[#allocation2 + $0x52] sm:$0xff]
        %v626 = vld [vmem:[#allocation2 + $0x62] sm:$0xff]
        %v627 = vld [vmem:[#allocation2 + $0x6a] sm:$0xff]
        %v628 = vld [vmem:[#allocation2 + $0x7a] sm:$0xff]
        %v629 = vld [vmem:[#allocation2 + $0x82] sm:$0xff]
        %v630 = vld [vmem:[#allocation2 + $0x92] sm:$0xff]
        %v631 = vld [vmem:[#allocation2 + $0x9a] sm:$0xff]
        %v632 = vld [vmem:[#allocation2 + $0xaa] sm:$0xff]
        %v633 = vld [vmem:[#allocation2 + $0xb2] sm:$0xff]
        %v634 = vld [vmem:[#allocation2 + $0xc2] sm:$0xff]
        %v635 = vld [vmem:[#allocation2 + $0xca] sm:$0xff]
        %v636 = vld [vmem:[#allocation2 + $0xda] sm:$0xff]
        %v637 = vld [vmem:[#allocation2 + $0xe2] sm:$0xff]
        %v638 = vld [vmem:[#allocation2 + $0xf2] sm:$0xff]
        %v639 = vld [vmem:[#allocation2 + $0xfa] sm:$0xff]
        %v640 = vld [vmem:[#allocation2 + $0x10a] sm:$0xff]
        %v641 = vld [vmem:[#allocation2 + $0x112] sm:$0xff]
        %v642 = vld [vmem:[#allocation2 + $0x122] sm:$0xff]
        %v643 = vld [vmem:[#allocation2 + $0x12a] sm:$0xff]
        %v644 = vld [vmem:[#allocation2 + $0x13a] sm:$0xff]
        %v645 = vld [vmem:[#allocation2 + $0x142] sm:$0xff]
        %v646 = vld [vmem:[#allocation2 + $0x152] sm:$0xff]
        %v647 = vld [vmem:[#allocation2 + $0x15a] sm:$0xff]
        %v648 = vld [vmem:[#allocation2 + $0x16a] sm:$0xff]
        %v649 = vld [vmem:[#allocation2 + $0x172] sm:$0xff]
        %682 = vrot.lane.b32.xlu0 %v618, 8
        %v683 = vpop.permute.xlu0 %682
        %684 = vrot.lane.b32.xlu0 %v619, 8
        %v685 = vpop.permute.xlu0 %684
        %686 = vrot.lane.b32.xlu0 %v620, 8
        %v687 = vpop.permute.xlu0 %686
        %688 = vrot.lane.b32.xlu0 %v621, 8
        %v689 = vpop.permute.xlu0 %688
        %690 = vrot.lane.b32.xlu0 %v622, 8
        %v691 = vpop.permute.xlu0 %690
        %692 = vrot.lane.b32.xlu0 %v623, 8
        %v693 = vpop.permute.xlu0 %692
        %694 = vrot.lane.b32.xlu0 %v624, 8
        %v695 = vpop.permute.xlu0 %694
        %696 = vrot.lane.b32.xlu0 %v625, 8
        %v697 = vpop.permute.xlu0 %696
        %698 = vrot.lane.b32.xlu0 %v626, 8
        %v699 = vpop.permute.xlu0 %698
        %700 = vrot.lane.b32.xlu0 %v627, 8
        %v701 = vpop.permute.xlu0 %700
        %702 = vrot.lane.b32.xlu0 %v628, 8
        %v703 = vpop.permute.xlu0 %702
        %704 = vrot.lane.b32.xlu0 %v629, 8
        %v705 = vpop.permute.xlu0 %704
        %706 = vrot.lane.b32.xlu0 %v630, 8
        %v707 = vpop.permute.xlu0 %706
        %708 = vrot.lane.b32.xlu0 %v631, 8
        %v709 = vpop.permute.xlu0 %708
        %710 = vrot.lane.b32.xlu0 %v632, 8
        %v711 = vpop.permute.xlu0 %710
        %712 = vrot.lane.b32.xlu0 %v633, 8
        %v713 = vpop.permute.xlu0 %712
        %714 = vrot.lane.b32.xlu0 %v634, 8
        %v715 = vpop.permute.xlu0 %714
        %716 = vrot.lane.b32.xlu0 %v635, 8
        %v717 = vpop.permute.xlu0 %716
        %718 = vrot.lane.b32.xlu0 %v636, 8
        %v719 = vpop.permute.xlu0 %718
        %720 = vrot.lane.b32.xlu0 %v637, 8
        %v721 = vpop.permute.xlu0 %720
        %722 = vrot.lane.b32.xlu0 %v638, 8
        %v723 = vpop.permute.xlu0 %722
        %724 = vrot.lane.b32.xlu0 %v639, 8
        %v725 = vpop.permute.xlu0 %724
        %726 = vrot.lane.b32.xlu0 %v640, 8
        %v727 = vpop.permute.xlu0 %726
        %728 = vrot.lane.b32.xlu0 %v641, 8
        %v729 = vpop.permute.xlu0 %728
        %730 = vrot.lane.b32.xlu0 %v642, 8
        %v731 = vpop.permute.xlu0 %730
        %732 = vrot.lane.b32.xlu0 %v643, 8
        %v733 = vpop.permute.xlu0 %732
        %734 = vrot.lane.b32.xlu0 %v644, 8
        %v735 = vpop.permute.xlu0 %734
        %736 = vrot.lane.b32.xlu0 %v645, 8
        %v737 = vpop.permute.xlu0 %736
        %738 = vrot.lane.b32.xlu0 %v646, 8
        %v739 = vpop.permute.xlu0 %738
        %740 = vrot.lane.b32.xlu0 %v647, 8
        %v741 = vpop.permute.xlu0 %740
        %742 = vrot.lane.b32.xlu0 %v648, 8
        %v743 = vpop.permute.xlu0 %742
        %744 = vrot.lane.b32.xlu0 %v649, 8
        %v745 = vpop.permute.xlu0 %744
        %vm778 = vcmask 97344
        %779 = vst.msk [vmem:[#allocation3] sm:$0xff] %vm778, %v683
        %780 = vst.msk [vmem:[#allocation3 + $0x8] sm:$0xff] %vm778, %v685
        %781 = vst.msk [vmem:[#allocation3 + $0x10] sm:$0xff] %vm778, %v687
        %782 = vst.msk [vmem:[#allocation3 + $0x18] sm:$0xff] %vm778, %v689
        %783 = vst.msk [vmem:[#allocation3 + $0x20] sm:$0xff] %vm778, %v691
        %784 = vst.msk [vmem:[#allocation3 + $0x28] sm:$0xff] %vm778, %v693
        %785 = vst.msk [vmem:[#allocation3 + $0x30] sm:$0xff] %vm778, %v695
        %786 = vst.msk [vmem:[#allocation3 + $0x38] sm:$0xff] %vm778, %v697
        %787 = vst.msk [vmem:[#allocation3 + $0x40] sm:$0xff] %vm778, %v699
        %788 = vst.msk [vmem:[#allocation3 + $0x48] sm:$0xff] %vm778, %v701
        %789 = vst.msk [vmem:[#allocation3 + $0x50] sm:$0xff] %vm778, %v703
        %790 = vst.msk [vmem:[#allocation3 + $0x58] sm:$0xff] %vm778, %v705
        %791 = vst.msk [vmem:[#allocation3 + $0x60] sm:$0xff] %vm778, %v707
        %792 = vst.msk [vmem:[#allocation3 + $0x68] sm:$0xff] %vm778, %v709
        %793 = vst.msk [vmem:[#allocation3 + $0x70] sm:$0xff] %vm778, %v711
        %794 = vst.msk [vmem:[#allocation3 + $0x78] sm:$0xff] %vm778, %v713
        %795 = vst.msk [vmem:[#allocation3 + $0x80] sm:$0xff] %vm778, %v715
        %796 = vst.msk [vmem:[#allocation3 + $0x88] sm:$0xff] %vm778, %v717
        %797 = vst.msk [vmem:[#allocation3 + $0x90] sm:$0xff] %vm778, %v719
        %798 = vst.msk [vmem:[#allocation3 + $0x98] sm:$0xff] %vm778, %v721
        %799 = vst.msk [vmem:[#allocation3 + $0xa0] sm:$0xff] %vm778, %v723
        %800 = vst.msk [vmem:[#allocation3 + $0xa8] sm:$0xff] %vm778, %v725
        %801 = vst.msk [vmem:[#allocation3 + $0xb0] sm:$0xff] %vm778, %v727
        %802 = vst.msk [vmem:[#allocation3 + $0xb8] sm:$0xff] %vm778, %v729
        %803 = vst.msk [vmem:[#allocation3 + $0xc0] sm:$0xff] %vm778, %v731
        %804 = vst.msk [vmem:[#allocation3 + $0xc8] sm:$0xff] %vm778, %v733
        %805 = vst.msk [vmem:[#allocation3 + $0xd0] sm:$0xff] %vm778, %v735
        %806 = vst.msk [vmem:[#allocation3 + $0xd8] sm:$0xff] %vm778, %v737
        %807 = vst.msk [vmem:[#allocation3 + $0xe0] sm:$0xff] %vm778, %v739
        %808 = vst.msk [vmem:[#allocation3 + $0xe8] sm:$0xff] %vm778, %v741
        %809 = vst.msk [vmem:[#allocation3 + $0xf0] sm:$0xff] %vm778, %v743
        %810 = vst.msk [vmem:[#allocation3 + $0xf8] sm:$0xff] %vm778, %v745
        %v811 = vld [vmem:[%s328] sm:$0xff]
        %v812 = vld [vmem:[%s328 + $0x8] sm:$0xff]
        %v813 = vld [vmem:[%s328 + $0x18] sm:$0xff]
        %v814 = vld [vmem:[%s328 + $0x20] sm:$0xff]
        %v815 = vld [vmem:[%s328 + $0x30] sm:$0xff]
        %v816 = vld [vmem:[%s328 + $0x38] sm:$0xff]
        %v817 = vld [vmem:[%s328 + $0x48] sm:$0xff]
        %v818 = vld [vmem:[%s328 + $0x50] sm:$0xff]
        %v819 = vld [vmem:[%s328 + $0x60] sm:$0xff]
        %v820 = vld [vmem:[%s328 + $0x68] sm:$0xff]
        %v821 = vld [vmem:[%s328 + $0x78] sm:$0xff]
        %v822 = vld [vmem:[%s328 + $0x80] sm:$0xff]
        %v823 = vld [vmem:[%s328 + $0x90] sm:$0xff]
        %v824 = vld [vmem:[%s328 + $0x98] sm:$0xff]
        %v825 = vld [vmem:[%s328 + $0xa8] sm:$0xff]
        %v826 = vld [vmem:[%s328 + $0xb0] sm:$0xff]
        %v827 = vld [vmem:[%s328 + $0xc0] sm:$0xff]
        %v828 = vld [vmem:[%s328 + $0xc8] sm:$0xff]
        %v829 = vld [vmem:[%s328 + $0xd8] sm:$0xff]
        %v830 = vld [vmem:[%s328 + $0xe0] sm:$0xff]
        %v831 = vld [vmem:[%s328 + $0xf0] sm:$0xff]
        %v832 = vld [vmem:[%s328 + $0xf8] sm:$0xff]
        %v833 = vld [vmem:[%s328 + $0x108] sm:$0xff]
        %v834 = vld [vmem:[%s328 + $0x110] sm:$0xff]
        %v835 = vld [vmem:[%s328 + $0x120] sm:$0xff]
        %v836 = vld [vmem:[%s328 + $0x128] sm:$0xff]
        %v837 = vld [vmem:[%s328 + $0x138] sm:$0xff]
        %v838 = vld [vmem:[%s328 + $0x140] sm:$0xff]
        %v839 = vld [vmem:[%s328 + $0x150] sm:$0xff]
        %v840 = vld [vmem:[%s328 + $0x158] sm:$0xff]
        %v841 = vld [vmem:[%s328 + $0x168] sm:$0xff]
        %v842 = vld [vmem:[%s328 + $0x170] sm:$0xff]
        %875 = vrot.lane.b32.xlu0 %v811, 12
        %v876 = vpop.permute.xlu0 %875
        %877 = vrot.lane.b32.xlu0 %v812, 12
        %v878 = vpop.permute.xlu0 %877
        %879 = vrot.lane.b32.xlu0 %v813, 12
        %v880 = vpop.permute.xlu0 %879
        %881 = vrot.lane.b32.xlu0 %v814, 12
        %v882 = vpop.permute.xlu0 %881
        %883 = vrot.lane.b32.xlu0 %v815, 12
        %v884 = vpop.permute.xlu0 %883
        %885 = vrot.lane.b32.xlu0 %v816, 12
        %v886 = vpop.permute.xlu0 %885
        %887 = vrot.lane.b32.xlu0 %v817, 12
        %v888 = vpop.permute.xlu0 %887
        %889 = vrot.lane.b32.xlu0 %v818, 12
        %v890 = vpop.permute.xlu0 %889
        %891 = vrot.lane.b32.xlu0 %v819, 12
        %v892 = vpop.permute.xlu0 %891
        %893 = vrot.lane.b32.xlu0 %v820, 12
        %v894 = vpop.permute.xlu0 %893
        %895 = vrot.lane.b32.xlu0 %v821, 12
        %v896 = vpop.permute.xlu0 %895
        %897 = vrot.lane.b32.xlu0 %v822, 12
        %v898 = vpop.permute.xlu0 %897
        %899 = vrot.lane.b32.xlu0 %v823, 12
        %v900 = vpop.permute.xlu0 %899
        %901 = vrot.lane.b32.xlu0 %v824, 12
        %v902 = vpop.permute.xlu0 %901
        %903 = vrot.lane.b32.xlu0 %v825, 12
        %v904 = vpop.permute.xlu0 %903
        %905 = vrot.lane.b32.xlu0 %v826, 12
        %v906 = vpop.permute.xlu0 %905
        %907 = vrot.lane.b32.xlu0 %v827, 12
        %v908 = vpop.permute.xlu0 %907
        %909 = vrot.lane.b32.xlu0 %v828, 12
        %v910 = vpop.permute.xlu0 %909
        %911 = vrot.lane.b32.xlu0 %v829, 12
        %v912 = vpop.permute.xlu0 %911
        %913 = vrot.lane.b32.xlu0 %v830, 12
        %v914 = vpop.permute.xlu0 %913
        %915 = vrot.lane.b32.xlu0 %v831, 12
        %v916 = vpop.permute.xlu0 %915
        %917 = vrot.lane.b32.xlu0 %v832, 12
        %v918 = vpop.permute.xlu0 %917
        %919 = vrot.lane.b32.xlu0 %v833, 12
        %v920 = vpop.permute.xlu0 %919
        %921 = vrot.lane.b32.xlu0 %v834, 12
        %v922 = vpop.permute.xlu0 %921
        %923 = vrot.lane.b32.xlu0 %v835, 12
        %v924 = vpop.permute.xlu0 %923
        %925 = vrot.lane.b32.xlu0 %v836, 12
        %v926 = vpop.permute.xlu0 %925
        %927 = vrot.lane.b32.xlu0 %v837, 12
        %v928 = vpop.permute.xlu0 %927
        %929 = vrot.lane.b32.xlu0 %v838, 12
        %v930 = vpop.permute.xlu0 %929
        %931 = vrot.lane.b32.xlu0 %v839, 12
        %v932 = vpop.permute.xlu0 %931
        %933 = vrot.lane.b32.xlu0 %v840, 12
        %v934 = vpop.permute.xlu0 %933
        %935 = vrot.lane.b32.xlu0 %v841, 12
        %v936 = vpop.permute.xlu0 %935
        %937 = vrot.lane.b32.xlu0 %v842, 12
        %v938 = vpop.permute.xlu0 %937
        %vm971 = vcmask 130144
        %972 = vst.msk [vmem:[#allocation3] sm:$0xff] %vm971, %v876
        %973 = vst.msk [vmem:[#allocation3 + $0x8] sm:$0xff] %vm971, %v878
        %974 = vst.msk [vmem:[#allocation3 + $0x10] sm:$0xff] %vm971, %v880
        %975 = vst.msk [vmem:[#allocation3 + $0x18] sm:$0xff] %vm971, %v882
        %976 = vst.msk [vmem:[#allocation3 + $0x20] sm:$0xff] %vm971, %v884
        %977 = vst.msk [vmem:[#allocation3 + $0x28] sm:$0xff] %vm971, %v886
        %978 = vst.msk [vmem:[#allocation3 + $0x30] sm:$0xff] %vm971, %v888
        %979 = vst.msk [vmem:[#allocation3 + $0x38] sm:$0xff] %vm971, %v890
        %980 = vst.msk [vmem:[#allocation3 + $0x40] sm:$0xff] %vm971, %v892
        %981 = vst.msk [vmem:[#allocation3 + $0x48] sm:$0xff] %vm971, %v894
        %982 = vst.msk [vmem:[#allocation3 + $0x50] sm:$0xff] %vm971, %v896
        %983 = vst.msk [vmem:[#allocation3 + $0x58] sm:$0xff] %vm971, %v898
        %984 = vst.msk [vmem:[#allocation3 + $0x60] sm:$0xff] %vm971, %v900
        %985 = vst.msk [vmem:[#allocation3 + $0x68] sm:$0xff] %vm971, %v902
        %986 = vst.msk [vmem:[#allocation3 + $0x70] sm:$0xff] %vm971, %v904
        %987 = vst.msk [vmem:[#allocation3 + $0x78] sm:$0xff] %vm971, %v906
        %988 = vst.msk [vmem:[#allocation3 + $0x80] sm:$0xff] %vm971, %v908
        %989 = vst.msk [vmem:[#allocation3 + $0x88] sm:$0xff] %vm971, %v910
        %990 = vst.msk [vmem:[#allocation3 + $0x90] sm:$0xff] %vm971, %v912
        %991 = vst.msk [vmem:[#allocation3 + $0x98] sm:$0xff] %vm971, %v914
        %992 = vst.msk [vmem:[#allocation3 + $0xa0] sm:$0xff] %vm971, %v916
        %993 = vst.msk [vmem:[#allocation3 + $0xa8] sm:$0xff] %vm971, %v918
        %994 = vst.msk [vmem:[#allocation3 + $0xb0] sm:$0xff] %vm971, %v920
        %995 = vst.msk [vmem:[#allocation3 + $0xb8] sm:$0xff] %vm971, %v922
        %996 = vst.msk [vmem:[#allocation3 + $0xc0] sm:$0xff] %vm971, %v924
        %997 = vst.msk [vmem:[#allocation3 + $0xc8] sm:$0xff] %vm971, %v926
        %998 = vst.msk [vmem:[#allocation3 + $0xd0] sm:$0xff] %vm971, %v928
        %999 = vst.msk [vmem:[#allocation3 + $0xd8] sm:$0xff] %vm971, %v930
        %1000 = vst.msk [vmem:[#allocation3 + $0xe0] sm:$0xff] %vm971, %v932
        %1001 = vst.msk [vmem:[#allocation3 + $0xe8] sm:$0xff] %vm971, %v934
        %1002 = vst.msk [vmem:[#allocation3 + $0xf0] sm:$0xff] %vm971, %v936
        %1003 = vst.msk [vmem:[#allocation3 + $0xf8] sm:$0xff] %vm971, %v938
        %v1004 = vld [vmem:[%s328 + $0x1] sm:$0xff]
        %v1005 = vld [vmem:[%s328 + $0x9] sm:$0xff]
        %v1006 = vld [vmem:[%s328 + $0x19] sm:$0xff]
        %v1007 = vld [vmem:[%s328 + $0x21] sm:$0xff]
        %v1008 = vld [vmem:[%s328 + $0x31] sm:$0xff]
        %v1009 = vld [vmem:[%s328 + $0x39] sm:$0xff]
        %v1010 = vld [vmem:[%s328 + $0x49] sm:$0xff]
        %v1011 = vld [vmem:[%s328 + $0x51] sm:$0xff]
        %v1012 = vld [vmem:[%s328 + $0x61] sm:$0xff]
        %v1013 = vld [vmem:[%s328 + $0x69] sm:$0xff]
        %v1014 = vld [vmem:[%s328 + $0x79] sm:$0xff]
        %v1015 = vld [vmem:[%s328 + $0x81] sm:$0xff]
        %v1016 = vld [vmem:[%s328 + $0x91] sm:$0xff]
        %v1017 = vld [vmem:[%s328 + $0x99] sm:$0xff]
        %v1018 = vld [vmem:[%s328 + $0xa9] sm:$0xff]
        %v1019 = vld [vmem:[%s328 + $0xb1] sm:$0xff]
        %v1020 = vld [vmem:[%s328 + $0xc1] sm:$0xff]
        %v1021 = vld [vmem:[%s328 + $0xc9] sm:$0xff]
        %v1022 = vld [vmem:[%s328 + $0xd9] sm:$0xff]
        %v1023 = vld [vmem:[%s328 + $0xe1] sm:$0xff]
        %v1024 = vld [vmem:[%s328 + $0xf1] sm:$0xff]
        %v1025 = vld [vmem:[%s328 + $0xf9] sm:$0xff]
        %v1026 = vld [vmem:[%s328 + $0x109] sm:$0xff]
        %v1027 = vld [vmem:[%s328 + $0x111] sm:$0xff]
        %v1028 = vld [vmem:[%s328 + $0x121] sm:$0xff]
        %v1029 = vld [vmem:[%s328 + $0x129] sm:$0xff]
        %v1030 = vld [vmem:[%s328 + $0x139] sm:$0xff]
        %v1031 = vld [vmem:[%s328 + $0x141] sm:$0xff]
        %v1032 = vld [vmem:[%s328 + $0x151] sm:$0xff]
        %v1033 = vld [vmem:[%s328 + $0x159] sm:$0xff]
        %v1034 = vld [vmem:[%s328 + $0x169] sm:$0xff]
        %v1035 = vld [vmem:[%s328 + $0x171] sm:$0xff]
        %1068 = vrot.lane.b32.xlu0 %v1004, 16
        %v1069 = vpop.permute.xlu0 %1068
        %1070 = vrot.lane.b32.xlu0 %v1005, 16
        %v1071 = vpop.permute.xlu0 %1070
        %1072 = vrot.lane.b32.xlu0 %v1006, 16
        %v1073 = vpop.permute.xlu0 %1072
        %1074 = vrot.lane.b32.xlu0 %v1007, 16
        %v1075 = vpop.permute.xlu0 %1074
        %1076 = vrot.lane.b32.xlu0 %v1008, 16
        %v1077 = vpop.permute.xlu0 %1076
        %1078 = vrot.lane.b32.xlu0 %v1009, 16
        %v1079 = vpop.permute.xlu0 %1078
        %1080 = vrot.lane.b32.xlu0 %v1010, 16
        %v1081 = vpop.permute.xlu0 %1080
        %1082 = vrot.lane.b32.xlu0 %v1011, 16
        %v1083 = vpop.permute.xlu0 %1082
        %1084 = vrot.lane.b32.xlu0 %v1012, 16
        %v1085 = vpop.permute.xlu0 %1084
        %1086 = vrot.lane.b32.xlu0 %v1013, 16
        %v1087 = vpop.permute.xlu0 %1086
        %1088 = vrot.lane.b32.xlu0 %v1014, 16
        %v1089 = vpop.permute.xlu0 %1088
        %1090 = vrot.lane.b32.xlu0 %v1015, 16
        %v1091 = vpop.permute.xlu0 %1090
        %1092 = vrot.lane.b32.xlu0 %v1016, 16
        %v1093 = vpop.permute.xlu0 %1092
        %1094 = vrot.lane.b32.xlu0 %v1017, 16
        %v1095 = vpop.permute.xlu0 %1094
        %1096 = vrot.lane.b32.xlu0 %v1018, 16
        %v1097 = vpop.permute.xlu0 %1096
        %1098 = vrot.lane.b32.xlu0 %v1019, 16
        %v1099 = vpop.permute.xlu0 %1098
        %1100 = vrot.lane.b32.xlu0 %v1020, 16
        %v1101 = vpop.permute.xlu0 %1100
        %1102 = vrot.lane.b32.xlu0 %v1021, 16
        %v1103 = vpop.permute.xlu0 %1102
        %1104 = vrot.lane.b32.xlu0 %v1022, 16
        %v1105 = vpop.permute.xlu0 %1104
        %1106 = vrot.lane.b32.xlu0 %v1023, 16
        %v1107 = vpop.permute.xlu0 %1106
        %1108 = vrot.lane.b32.xlu0 %v1024, 16
        %v1109 = vpop.permute.xlu0 %1108
        %1110 = vrot.lane.b32.xlu0 %v1025, 16
        %v1111 = vpop.permute.xlu0 %1110
        %1112 = vrot.lane.b32.xlu0 %v1026, 16
        %v1113 = vpop.permute.xlu0 %1112
        %1114 = vrot.lane.b32.xlu0 %v1027, 16
        %v1115 = vpop.permute.xlu0 %1114
        %1116 = vrot.lane.b32.xlu0 %v1028, 16
        %v1117 = vpop.permute.xlu0 %1116
        %1118 = vrot.lane.b32.xlu0 %v1029, 16
        %v1119 = vpop.permute.xlu0 %1118
        %1120 = vrot.lane.b32.xlu0 %v1030, 16
        %v1121 = vpop.permute.xlu0 %1120
        %1122 = vrot.lane.b32.xlu0 %v1031, 16
        %v1123 = vpop.permute.xlu0 %1122
        %1124 = vrot.lane.b32.xlu0 %v1032, 16
        %v1125 = vpop.permute.xlu0 %1124
        %1126 = vrot.lane.b32.xlu0 %v1033, 16
        %v1127 = vpop.permute.xlu0 %1126
        %1128 = vrot.lane.b32.xlu0 %v1034, 16
        %v1129 = vpop.permute.xlu0 %1128
        %1130 = vrot.lane.b32.xlu0 %v1035, 16
        %v1131 = vpop.permute.xlu0 %1130
        %vm1164 = vcmask 162944
        %1165 = vst.msk [vmem:[#allocation3] sm:$0xff] %vm1164, %v1069
        %1166 = vst.msk [vmem:[#allocation3 + $0x8] sm:$0xff] %vm1164, %v1071
        %1167 = vst.msk [vmem:[#allocation3 + $0x10] sm:$0xff] %vm1164, %v1073
        %1168 = vst.msk [vmem:[#allocation3 + $0x18] sm:$0xff] %vm1164, %v1075
        %1169 = vst.msk [vmem:[#allocation3 + $0x20] sm:$0xff] %vm1164, %v1077
        %1170 = vst.msk [vmem:[#allocation3 + $0x28] sm:$0xff] %vm1164, %v1079
        %1171 = vst.msk [vmem:[#allocation3 + $0x30] sm:$0xff] %vm1164, %v1081
        %1172 = vst.msk [vmem:[#allocation3 + $0x38] sm:$0xff] %vm1164, %v1083
        %1173 = vst.msk [vmem:[#allocation3 + $0x40] sm:$0xff] %vm1164, %v1085
        %1174 = vst.msk [vmem:[#allocation3 + $0x48] sm:$0xff] %vm1164, %v1087
        %1175 = vst.msk [vmem:[#allocation3 + $0x50] sm:$0xff] %vm1164, %v1089
        %1176 = vst.msk [vmem:[#allocation3 + $0x58] sm:$0xff] %vm1164, %v1091
        %1177 = vst.msk [vmem:[#allocation3 + $0x60] sm:$0xff] %vm1164, %v1093
        %1178 = vst.msk [vmem:[#allocation3 + $0x68] sm:$0xff] %vm1164, %v1095
        %1179 = vst.msk [vmem:[#allocation3 + $0x70] sm:$0xff] %vm1164, %v1097
        %1180 = vst.msk [vmem:[#allocation3 + $0x78] sm:$0xff] %vm1164, %v1099
        %1181 = vst.msk [vmem:[#allocation3 + $0x80] sm:$0xff] %vm1164, %v1101
        %1182 = vst.msk [vmem:[#allocation3 + $0x88] sm:$0xff] %vm1164, %v1103
        %1183 = vst.msk [vmem:[#allocation3 + $0x90] sm:$0xff] %vm1164, %v1105
        %1184 = vst.msk [vmem:[#allocation3 + $0x98] sm:$0xff] %vm1164, %v1107
        %1185 = vst.msk [vmem:[#allocation3 + $0xa0] sm:$0xff] %vm1164, %v1109
        %1186 = vst.msk [vmem:[#allocation3 + $0xa8] sm:$0xff] %vm1164, %v1111
        %1187 = vst.msk [vmem:[#allocation3 + $0xb0] sm:$0xff] %vm1164, %v1113
        %1188 = vst.msk [vmem:[#allocation3 + $0xb8] sm:$0xff] %vm1164, %v1115
        %1189 = vst.msk [vmem:[#allocation3 + $0xc0] sm:$0xff] %vm1164, %v1117
        %1190 = vst.msk [vmem:[#allocation3 + $0xc8] sm:$0xff] %vm1164, %v1119
        %1191 = vst.msk [vmem:[#allocation3 + $0xd0] sm:$0xff] %vm1164, %v1121
        %1192 = vst.msk [vmem:[#allocation3 + $0xd8] sm:$0xff] %vm1164, %v1123
        %1193 = vst.msk [vmem:[#allocation3 + $0xe0] sm:$0xff] %vm1164, %v1125
        %1194 = vst.msk [vmem:[#allocation3 + $0xe8] sm:$0xff] %vm1164, %v1127
        %1195 = vst.msk [vmem:[#allocation3 + $0xf0] sm:$0xff] %vm1164, %v1129
        %1196 = vst.msk [vmem:[#allocation3 + $0xf8] sm:$0xff] %vm1164, %v1131
        %v1197 = vld [vmem:[%s328 + $0x2] sm:$0xff]
        %v1198 = vld [vmem:[%s328 + $0xa] sm:$0xff]
        %v1199 = vld [vmem:[%s328 + $0x1a] sm:$0xff]
        %v1200 = vld [vmem:[%s328 + $0x22] sm:$0xff]
        %v1201 = vld [vmem:[%s328 + $0x32] sm:$0xff]
        %v1202 = vld [vmem:[%s328 + $0x3a] sm:$0xff]
        %v1203 = vld [vmem:[%s328 + $0x4a] sm:$0xff]
        %v1204 = vld [vmem:[%s328 + $0x52] sm:$0xff]
        %v1205 = vld [vmem:[%s328 + $0x62] sm:$0xff]
        %v1206 = vld [vmem:[%s328 + $0x6a] sm:$0xff]
        %v1207 = vld [vmem:[%s328 + $0x7a] sm:$0xff]
        %v1208 = vld [vmem:[%s328 + $0x82] sm:$0xff]
        %v1209 = vld [vmem:[%s328 + $0x92] sm:$0xff]
        %v1210 = vld [vmem:[%s328 + $0x9a] sm:$0xff]
        %v1211 = vld [vmem:[%s328 + $0xaa] sm:$0xff]
        %v1212 = vld [vmem:[%s328 + $0xb2] sm:$0xff]
        %v1213 = vld [vmem:[%s328 + $0xc2] sm:$0xff]
        %v1214 = vld [vmem:[%s328 + $0xca] sm:$0xff]
        %v1215 = vld [vmem:[%s328 + $0xda] sm:$0xff]
        %v1216 = vld [vmem:[%s328 + $0xe2] sm:$0xff]
        %v1217 = vld [vmem:[%s328 + $0xf2] sm:$0xff]
        %v1218 = vld [vmem:[%s328 + $0xfa] sm:$0xff]
        %v1219 = vld [vmem:[%s328 + $0x10a] sm:$0xff]
        %v1220 = vld [vmem:[%s328 + $0x112] sm:$0xff]
        %v1221 = vld [vmem:[%s328 + $0x122] sm:$0xff]
        %v1222 = vld [vmem:[%s328 + $0x12a] sm:$0xff]
        %v1223 = vld [vmem:[%s328 + $0x13a] sm:$0xff]
        %v1224 = vld [vmem:[%s328 + $0x142] sm:$0xff]
        %v1225 = vld [vmem:[%s328 + $0x152] sm:$0xff]
        %v1226 = vld [vmem:[%s328 + $0x15a] sm:$0xff]
        %v1227 = vld [vmem:[%s328 + $0x16a] sm:$0xff]
        %v1228 = vld [vmem:[%s328 + $0x172] sm:$0xff]
        %1261 = vrot.lane.b32.xlu0 %v1197, 20
        %v1262 = vpop.permute.xlu0 %1261
        %1263 = vrot.lane.b32.xlu0 %v1198, 20
        %v1264 = vpop.permute.xlu0 %1263
        %1265 = vrot.lane.b32.xlu0 %v1199, 20
        %v1266 = vpop.permute.xlu0 %1265
        %1267 = vrot.lane.b32.xlu0 %v1200, 20
        %v1268 = vpop.permute.xlu0 %1267
        %1269 = vrot.lane.b32.xlu0 %v1201, 20
        %v1270 = vpop.permute.xlu0 %1269
        %1271 = vrot.lane.b32.xlu0 %v1202, 20
        %v1272 = vpop.permute.xlu0 %1271
        %1273 = vrot.lane.b32.xlu0 %v1203, 20
        %v1274 = vpop.permute.xlu0 %1273
        %1275 = vrot.lane.b32.xlu0 %v1204, 20
        %v1276 = vpop.permute.xlu0 %1275
        %1277 = vrot.lane.b32.xlu0 %v1205, 20
        %v1278 = vpop.permute.xlu0 %1277
        %1279 = vrot.lane.b32.xlu0 %v1206, 20
        %v1280 = vpop.permute.xlu0 %1279
        %1281 = vrot.lane.b32.xlu0 %v1207, 20
        %v1282 = vpop.permute.xlu0 %1281
        %1283 = vrot.lane.b32.xlu0 %v1208, 20
        %v1284 = vpop.permute.xlu0 %1283
        %1285 = vrot.lane.b32.xlu0 %v1209, 20
        %v1286 = vpop.permute.xlu0 %1285
        %1287 = vrot.lane.b32.xlu0 %v1210, 20
        %v1288 = vpop.permute.xlu0 %1287
        %1289 = vrot.lane.b32.xlu0 %v1211, 20
        %v1290 = vpop.permute.xlu0 %1289
        %1291 = vrot.lane.b32.xlu0 %v1212, 20
        %v1292 = vpop.permute.xlu0 %1291
        %1293 = vrot.lane.b32.xlu0 %v1213, 20
        %v1294 = vpop.permute.xlu0 %1293
        %1295 = vrot.lane.b32.xlu0 %v1214, 20
        %v1296 = vpop.permute.xlu0 %1295
        %1297 = vrot.lane.b32.xlu0 %v1215, 20
        %v1298 = vpop.permute.xlu0 %1297
        %1299 = vrot.lane.b32.xlu0 %v1216, 20
        %v1300 = vpop.permute.xlu0 %1299
        %1301 = vrot.lane.b32.xlu0 %v1217, 20
        %v1302 = vpop.permute.xlu0 %1301
        %1303 = vrot.lane.b32.xlu0 %v1218, 20
        %v1304 = vpop.permute.xlu0 %1303
        %1305 = vrot.lane.b32.xlu0 %v1219, 20
        %v1306 = vpop.permute.xlu0 %1305
        %1307 = vrot.lane.b32.xlu0 %v1220, 20
        %v1308 = vpop.permute.xlu0 %1307
        %1309 = vrot.lane.b32.xlu0 %v1221, 20
        %v1310 = vpop.permute.xlu0 %1309
        %1311 = vrot.lane.b32.xlu0 %v1222, 20
        %v1312 = vpop.permute.xlu0 %1311
        %1313 = vrot.lane.b32.xlu0 %v1223, 20
        %v1314 = vpop.permute.xlu0 %1313
        %1315 = vrot.lane.b32.xlu0 %v1224, 20
        %v1316 = vpop.permute.xlu0 %1315
        %1317 = vrot.lane.b32.xlu0 %v1225, 20
        %v1318 = vpop.permute.xlu0 %1317
        %1319 = vrot.lane.b32.xlu0 %v1226, 20
        %v1320 = vpop.permute.xlu0 %1319
        %1321 = vrot.lane.b32.xlu0 %v1227, 20
        %v1322 = vpop.permute.xlu0 %1321
        %1323 = vrot.lane.b32.xlu0 %v1228, 20
        %v1324 = vpop.permute.xlu0 %1323
        %vm1357 = vcmask 195744
        %1358 = vst.msk [vmem:[#allocation3] sm:$0xff] %vm1357, %v1262
        %1359 = vst.msk [vmem:[#allocation3 + $0x8] sm:$0xff] %vm1357, %v1264
        %1360 = vst.msk [vmem:[#allocation3 + $0x10] sm:$0xff] %vm1357, %v1266
        %1361 = vst.msk [vmem:[#allocation3 + $0x18] sm:$0xff] %vm1357, %v1268
        %1362 = vst.msk [vmem:[#allocation3 + $0x20] sm:$0xff] %vm1357, %v1270
        %1363 = vst.msk [vmem:[#allocation3 + $0x28] sm:$0xff] %vm1357, %v1272
        %1364 = vst.msk [vmem:[#allocation3 + $0x30] sm:$0xff] %vm1357, %v1274
        %1365 = vst.msk [vmem:[#allocation3 + $0x38] sm:$0xff] %vm1357, %v1276
        %1366 = vst.msk [vmem:[#allocation3 + $0x40] sm:$0xff] %vm1357, %v1278
        %1367 = vst.msk [vmem:[#allocation3 + $0x48] sm:$0xff] %vm1357, %v1280
        %1368 = vst.msk [vmem:[#allocation3 + $0x50] sm:$0xff] %vm1357, %v1282
        %1369 = vst.msk [vmem:[#allocation3 + $0x58] sm:$0xff] %vm1357, %v1284
        %1370 = vst.msk [vmem:[#allocation3 + $0x60] sm:$0xff] %vm1357, %v1286
        %1371 = vst.msk [vmem:[#allocation3 + $0x68] sm:$0xff] %vm1357, %v1288
        %1372 = vst.msk [vmem:[#allocation3 + $0x70] sm:$0xff] %vm1357, %v1290
        %1373 = vst.msk [vmem:[#allocation3 + $0x78] sm:$0xff] %vm1357, %v1292
        %1374 = vst.msk [vmem:[#allocation3 + $0x80] sm:$0xff] %vm1357, %v1294
        %1375 = vst.msk [vmem:[#allocation3 + $0x88] sm:$0xff] %vm1357, %v1296
        %1376 = vst.msk [vmem:[#allocation3 + $0x90] sm:$0xff] %vm1357, %v1298
        %1377 = vst.msk [vmem:[#allocation3 + $0x98] sm:$0xff] %vm1357, %v1300
        %1378 = vst.msk [vmem:[#allocation3 + $0xa0] sm:$0xff] %vm1357, %v1302
        %1379 = vst.msk [vmem:[#allocation3 + $0xa8] sm:$0xff] %vm1357, %v1304
        %1380 = vst.msk [vmem:[#allocation3 + $0xb0] sm:$0xff] %vm1357, %v1306
        %1381 = vst.msk [vmem:[#allocation3 + $0xb8] sm:$0xff] %vm1357, %v1308
        %1382 = vst.msk [vmem:[#allocation3 + $0xc0] sm:$0xff] %vm1357, %v1310
        %1383 = vst.msk [vmem:[#allocation3 + $0xc8] sm:$0xff] %vm1357, %v1312
        %1384 = vst.msk [vmem:[#allocation3 + $0xd0] sm:$0xff] %vm1357, %v1314
        %1385 = vst.msk [vmem:[#allocation3 + $0xd8] sm:$0xff] %vm1357, %v1316
        %1386 = vst.msk [vmem:[#allocation3 + $0xe0] sm:$0xff] %vm1357, %v1318
        %1387 = vst.msk [vmem:[#allocation3 + $0xe8] sm:$0xff] %vm1357, %v1320
        %1388 = vst.msk [vmem:[#allocation3 + $0xf0] sm:$0xff] %vm1357, %v1322
        %1389 = vst.msk [vmem:[#allocation3 + $0xf8] sm:$0xff] %vm1357, %v1324
        %s1390 = scalar_lea.vmem [#allocation2], 48
        %v1391 = vld [vmem:[%s1390] sm:$0xff]
        %v1392 = vld [vmem:[%s1390 + $0x8] sm:$0xff]
        %v1393 = vld [vmem:[%s1390 + $0x18] sm:$0xff]
        %v1394 = vld [vmem:[%s1390 + $0x20] sm:$0xff]
        %v1395 = vld [vmem:[%s1390 + $0x30] sm:$0xff]
        %v1396 = vld [vmem:[%s1390 + $0x38] sm:$0xff]
        %v1397 = vld [vmem:[%s1390 + $0x48] sm:$0xff]
        %v1398 = vld [vmem:[%s1390 + $0x50] sm:$0xff]
        %v1399 = vld [vmem:[%s1390 + $0x60] sm:$0xff]
        %v1400 = vld [vmem:[%s1390 + $0x68] sm:$0xff]
        %v1401 = vld [vmem:[%s1390 + $0x78] sm:$0xff]
        %v1402 = vld [vmem:[%s1390 + $0x80] sm:$0xff]
        %v1403 = vld [vmem:[%s1390 + $0x90] sm:$0xff]
        %v1404 = vld [vmem:[%s1390 + $0x98] sm:$0xff]
        %v1405 = vld [vmem:[%s1390 + $0xa8] sm:$0xff]
        %v1406 = vld [vmem:[%s1390 + $0xb0] sm:$0xff]
        %v1407 = vld [vmem:[%s1390 + $0xc0] sm:$0xff]
        %v1408 = vld [vmem:[%s1390 + $0xc8] sm:$0xff]
        %v1409 = vld [vmem:[%s1390 + $0xd8] sm:$0xff]
        %v1410 = vld [vmem:[%s1390 + $0xe0] sm:$0xff]
        %v1411 = vld [vmem:[%s1390 + $0xf0] sm:$0xff]
        %v1412 = vld [vmem:[%s1390 + $0xf8] sm:$0xff]
        %v1413 = vld [vmem:[%s1390 + $0x108] sm:$0xff]
        %v1414 = vld [vmem:[%s1390 + $0x110] sm:$0xff]
        %v1415 = vld [vmem:[%s1390 + $0x120] sm:$0xff]
        %v1416 = vld [vmem:[%s1390 + $0x128] sm:$0xff]
        %v1417 = vld [vmem:[%s1390 + $0x138] sm:$0xff]
        %v1418 = vld [vmem:[%s1390 + $0x140] sm:$0xff]
        %v1419 = vld [vmem:[%s1390 + $0x150] sm:$0xff]
        %v1420 = vld [vmem:[%s1390 + $0x158] sm:$0xff]
        %v1421 = vld [vmem:[%s1390 + $0x168] sm:$0xff]
        %v1422 = vld [vmem:[%s1390 + $0x170] sm:$0xff]
        %1455 = vrot.lane.b32.xlu0 %v1391, 24
        %v1456 = vpop.permute.xlu0 %1455
        %1457 = vrot.lane.b32.xlu0 %v1392, 24
        %v1458 = vpop.permute.xlu0 %1457
        %1459 = vrot.lane.b32.xlu0 %v1393, 24
        %v1460 = vpop.permute.xlu0 %1459
        %1461 = vrot.lane.b32.xlu0 %v1394, 24
        %v1462 = vpop.permute.xlu0 %1461
        %1463 = vrot.lane.b32.xlu0 %v1395, 24
        %v1464 = vpop.permute.xlu0 %1463
        %1465 = vrot.lane.b32.xlu0 %v1396, 24
        %v1466 = vpop.permute.xlu0 %1465
        %1467 = vrot.lane.b32.xlu0 %v1397, 24
        %v1468 = vpop.permute.xlu0 %1467
        %1469 = vrot.lane.b32.xlu0 %v1398, 24
        %v1470 = vpop.permute.xlu0 %1469
        %1471 = vrot.lane.b32.xlu0 %v1399, 24
        %v1472 = vpop.permute.xlu0 %1471
        %1473 = vrot.lane.b32.xlu0 %v1400, 24
        %v1474 = vpop.permute.xlu0 %1473
        %1475 = vrot.lane.b32.xlu0 %v1401, 24
        %v1476 = vpop.permute.xlu0 %1475
        %1477 = vrot.lane.b32.xlu0 %v1402, 24
        %v1478 = vpop.permute.xlu0 %1477
        %1479 = vrot.lane.b32.xlu0 %v1403, 24
        %v1480 = vpop.permute.xlu0 %1479
        %1481 = vrot.lane.b32.xlu0 %v1404, 24
        %v1482 = vpop.permute.xlu0 %1481
        %1483 = vrot.lane.b32.xlu0 %v1405, 24
        %v1484 = vpop.permute.xlu0 %1483
        %1485 = vrot.lane.b32.xlu0 %v1406, 24
        %v1486 = vpop.permute.xlu0 %1485
        %1487 = vrot.lane.b32.xlu0 %v1407, 24
        %v1488 = vpop.permute.xlu0 %1487
        %1489 = vrot.lane.b32.xlu0 %v1408, 24
        %v1490 = vpop.permute.xlu0 %1489
        %1491 = vrot.lane.b32.xlu0 %v1409, 24
        %v1492 = vpop.permute.xlu0 %1491
        %1493 = vrot.lane.b32.xlu0 %v1410, 24
        %v1494 = vpop.permute.xlu0 %1493
        %1495 = vrot.lane.b32.xlu0 %v1411, 24
        %v1496 = vpop.permute.xlu0 %1495
        %1497 = vrot.lane.b32.xlu0 %v1412, 24
        %v1498 = vpop.permute.xlu0 %1497
        %1499 = vrot.lane.b32.xlu0 %v1413, 24
        %v1500 = vpop.permute.xlu0 %1499
        %1501 = vrot.lane.b32.xlu0 %v1414, 24
        %v1502 = vpop.permute.xlu0 %1501
        %1503 = vrot.lane.b32.xlu0 %v1415, 24
        %v1504 = vpop.permute.xlu0 %1503
        %1505 = vrot.lane.b32.xlu0 %v1416, 24
        %v1506 = vpop.permute.xlu0 %1505
        %1507 = vrot.lane.b32.xlu0 %v1417, 24
        %v1508 = vpop.permute.xlu0 %1507
        %1509 = vrot.lane.b32.xlu0 %v1418, 24
        %v1510 = vpop.permute.xlu0 %1509
        %1511 = vrot.lane.b32.xlu0 %v1419, 24
        %v1512 = vpop.permute.xlu0 %1511
        %1513 = vrot.lane.b32.xlu0 %v1420, 24
        %v1514 = vpop.permute.xlu0 %1513
        %1515 = vrot.lane.b32.xlu0 %v1421, 24
        %v1516 = vpop.permute.xlu0 %1515
        %1517 = vrot.lane.b32.xlu0 %v1422, 24
        %v1518 = vpop.permute.xlu0 %1517
        %vm1551 = vcmask 228544
        %1552 = vst.msk [vmem:[#allocation3] sm:$0xff] %vm1551, %v1456
        %1553 = vst.msk [vmem:[#allocation3 + $0x8] sm:$0xff] %vm1551, %v1458
        %1554 = vst.msk [vmem:[#allocation3 + $0x10] sm:$0xff] %vm1551, %v1460
        %1555 = vst.msk [vmem:[#allocation3 + $0x18] sm:$0xff] %vm1551, %v1462
        %1556 = vst.msk [vmem:[#allocation3 + $0x20] sm:$0xff] %vm1551, %v1464
        %1557 = vst.msk [vmem:[#allocation3 + $0x28] sm:$0xff] %vm1551, %v1466
        %1558 = vst.msk [vmem:[#allocation3 + $0x30] sm:$0xff] %vm1551, %v1468
        %1559 = vst.msk [vmem:[#allocation3 + $0x38] sm:$0xff] %vm1551, %v1470
        %1560 = vst.msk [vmem:[#allocation3 + $0x40] sm:$0xff] %vm1551, %v1472
        %1561 = vst.msk [vmem:[#allocation3 + $0x48] sm:$0xff] %vm1551, %v1474
        %1562 = vst.msk [vmem:[#allocation3 + $0x50] sm:$0xff] %vm1551, %v1476
        %1563 = vst.msk [vmem:[#allocation3 + $0x58] sm:$0xff] %vm1551, %v1478
        %1564 = vst.msk [vmem:[#allocation3 + $0x60] sm:$0xff] %vm1551, %v1480
        %1565 = vst.msk [vmem:[#allocation3 + $0x68] sm:$0xff] %vm1551, %v1482
        %1566 = vst.msk [vmem:[#allocation3 + $0x70] sm:$0xff] %vm1551, %v1484
        %1567 = vst.msk [vmem:[#allocation3 + $0x78] sm:$0xff] %vm1551, %v1486
        %1568 = vst.msk [vmem:[#allocation3 + $0x80] sm:$0xff] %vm1551, %v1488
        %1569 = vst.msk [vmem:[#allocation3 + $0x88] sm:$0xff] %vm1551, %v1490
        %1570 = vst.msk [vmem:[#allocation3 + $0x90] sm:$0xff] %vm1551, %v1492
        %1571 = vst.msk [vmem:[#allocation3 + $0x98] sm:$0xff] %vm1551, %v1494
        %1572 = vst.msk [vmem:[#allocation3 + $0xa0] sm:$0xff] %vm1551, %v1496
        %1573 = vst.msk [vmem:[#allocation3 + $0xa8] sm:$0xff] %vm1551, %v1498
        %1574 = vst.msk [vmem:[#allocation3 + $0xb0] sm:$0xff] %vm1551, %v1500
        %1575 = vst.msk [vmem:[#allocation3 + $0xb8] sm:$0xff] %vm1551, %v1502
        %1576 = vst.msk [vmem:[#allocation3 + $0xc0] sm:$0xff] %vm1551, %v1504
        %1577 = vst.msk [vmem:[#allocation3 + $0xc8] sm:$0xff] %vm1551, %v1506
        %1578 = vst.msk [vmem:[#allocation3 + $0xd0] sm:$0xff] %vm1551, %v1508
        %1579 = vst.msk [vmem:[#allocation3 + $0xd8] sm:$0xff] %vm1551, %v1510
        %1580 = vst.msk [vmem:[#allocation3 + $0xe0] sm:$0xff] %vm1551, %v1512
        %1581 = vst.msk [vmem:[#allocation3 + $0xe8] sm:$0xff] %vm1551, %v1514
        %1582 = vst.msk [vmem:[#allocation3 + $0xf0] sm:$0xff] %vm1551, %v1516
        %1583 = vst.msk [vmem:[#allocation3 + $0xf8] sm:$0xff] %vm1551, %v1518
        %v1584 = vld [vmem:[%s1390 + $0x1] sm:$0xff]
        %v1585 = vld [vmem:[%s1390 + $0x9] sm:$0xff]
        %v1586 = vld [vmem:[%s1390 + $0x19] sm:$0xff]
        %v1587 = vld [vmem:[%s1390 + $0x21] sm:$0xff]
        %v1588 = vld [vmem:[%s1390 + $0x31] sm:$0xff]
        %v1589 = vld [vmem:[%s1390 + $0x39] sm:$0xff]
        %v1590 = vld [vmem:[%s1390 + $0x49] sm:$0xff]
        %v1591 = vld [vmem:[%s1390 + $0x51] sm:$0xff]
        %v1592 = vld [vmem:[%s1390 + $0x61] sm:$0xff]
        %v1593 = vld [vmem:[%s1390 + $0x69] sm:$0xff]
        %v1594 = vld [vmem:[%s1390 + $0x79] sm:$0xff]
        %v1595 = vld [vmem:[%s1390 + $0x81] sm:$0xff]
        %v1596 = vld [vmem:[%s1390 + $0x91] sm:$0xff]
        %v1597 = vld [vmem:[%s1390 + $0x99] sm:$0xff]
        %v1598 = vld [vmem:[%s1390 + $0xa9] sm:$0xff]
        %v1599 = vld [vmem:[%s1390 + $0xb1] sm:$0xff]
        %v1600 = vld [vmem:[%s1390 + $0xc1] sm:$0xff]
        %v1601 = vld [vmem:[%s1390 + $0xc9] sm:$0xff]
        %v1602 = vld [vmem:[%s1390 + $0xd9] sm:$0xff]
        %v1603 = vld [vmem:[%s1390 + $0xe1] sm:$0xff]
        %v1604 = vld [vmem:[%s1390 + $0xf1] sm:$0xff]
        %v1605 = vld [vmem:[%s1390 + $0xf9] sm:$0xff]
        %v1606 = vld [vmem:[%s1390 + $0x109] sm:$0xff]
        %v1607 = vld [vmem:[%s1390 + $0x111] sm:$0xff]
        %v1608 = vld [vmem:[%s1390 + $0x121] sm:$0xff]
        %v1609 = vld [vmem:[%s1390 + $0x129] sm:$0xff]
        %v1610 = vld [vmem:[%s1390 + $0x139] sm:$0xff]
        %v1611 = vld [vmem:[%s1390 + $0x141] sm:$0xff]
        %v1612 = vld [vmem:[%s1390 + $0x151] sm:$0xff]
        %v1613 = vld [vmem:[%s1390 + $0x159] sm:$0xff]
        %v1614 = vld [vmem:[%s1390 + $0x169] sm:$0xff]
        %v1615 = vld [vmem:[%s1390 + $0x171] sm:$0xff]
        %1648 = vrot.lane.b32.xlu0 %v1584, 28
        %v1649 = vpop.permute.xlu0 %1648
        %1650 = vrot.lane.b32.xlu0 %v1585, 28
        %v1651 = vpop.permute.xlu0 %1650
        %1652 = vrot.lane.b32.xlu0 %v1586, 28
        %v1653 = vpop.permute.xlu0 %1652
        %1654 = vrot.lane.b32.xlu0 %v1587, 28
        %v1655 = vpop.permute.xlu0 %1654
        %1656 = vrot.lane.b32.xlu0 %v1588, 28
        %v1657 = vpop.permute.xlu0 %1656
        %1658 = vrot.lane.b32.xlu0 %v1589, 28
        %v1659 = vpop.permute.xlu0 %1658
        %1660 = vrot.lane.b32.xlu0 %v1590, 28
        %v1661 = vpop.permute.xlu0 %1660
        %1662 = vrot.lane.b32.xlu0 %v1591, 28
        %v1663 = vpop.permute.xlu0 %1662
        %1664 = vrot.lane.b32.xlu0 %v1592, 28
        %v1665 = vpop.permute.xlu0 %1664
        %1666 = vrot.lane.b32.xlu0 %v1593, 28
        %v1667 = vpop.permute.xlu0 %1666
        %1668 = vrot.lane.b32.xlu0 %v1594, 28
        %v1669 = vpop.permute.xlu0 %1668
        %1670 = vrot.lane.b32.xlu0 %v1595, 28
        %v1671 = vpop.permute.xlu0 %1670
        %1672 = vrot.lane.b32.xlu0 %v1596, 28
        %v1673 = vpop.permute.xlu0 %1672
        %1674 = vrot.lane.b32.xlu0 %v1597, 28
        %v1675 = vpop.permute.xlu0 %1674
        %1676 = vrot.lane.b32.xlu0 %v1598, 28
        %v1677 = vpop.permute.xlu0 %1676
        %1678 = vrot.lane.b32.xlu0 %v1599, 28
        %v1679 = vpop.permute.xlu0 %1678
        %1680 = vrot.lane.b32.xlu0 %v1600, 28
        %v1681 = vpop.permute.xlu0 %1680
        %1682 = vrot.lane.b32.xlu0 %v1601, 28
        %v1683 = vpop.permute.xlu0 %1682
        %1684 = vrot.lane.b32.xlu0 %v1602, 28
        %v1685 = vpop.permute.xlu0 %1684
        %1686 = vrot.lane.b32.xlu0 %v1603, 28
        %v1687 = vpop.permute.xlu0 %1686
        %1688 = vrot.lane.b32.xlu0 %v1604, 28
        %v1689 = vpop.permute.xlu0 %1688
        %1690 = vrot.lane.b32.xlu0 %v1605, 28
        %v1691 = vpop.permute.xlu0 %1690
        %1692 = vrot.lane.b32.xlu0 %v1606, 28
        %v1693 = vpop.permute.xlu0 %1692
        %1694 = vrot.lane.b32.xlu0 %v1607, 28
        %v1695 = vpop.permute.xlu0 %1694
        %1696 = vrot.lane.b32.xlu0 %v1608, 28
        %v1697 = vpop.permute.xlu0 %1696
        %1698 = vrot.lane.b32.xlu0 %v1609, 28
        %v1699 = vpop.permute.xlu0 %1698
        %1700 = vrot.lane.b32.xlu0 %v1610, 28
        %v1701 = vpop.permute.xlu0 %1700
        %1702 = vrot.lane.b32.xlu0 %v1611, 28
        %v1703 = vpop.permute.xlu0 %1702
        %1704 = vrot.lane.b32.xlu0 %v1612, 28
        %v1705 = vpop.permute.xlu0 %1704
        %1706 = vrot.lane.b32.xlu0 %v1613, 28
        %v1707 = vpop.permute.xlu0 %1706
        %1708 = vrot.lane.b32.xlu0 %v1614, 28
        %v1709 = vpop.permute.xlu0 %1708
        %1710 = vrot.lane.b32.xlu0 %v1615, 28
        %v1711 = vpop.permute.xlu0 %1710
        %vm1744 = vcmask 261344
        %1745 = vst.msk [vmem:[#allocation3] sm:$0xff] %vm1744, %v1649
        %1746 = vst.msk [vmem:[#allocation3 + $0x8] sm:$0xff] %vm1744, %v1651
        %1747 = vst.msk [vmem:[#allocation3 + $0x10] sm:$0xff] %vm1744, %v1653
        %1748 = vst.msk [vmem:[#allocation3 + $0x18] sm:$0xff] %vm1744, %v1655
        %1749 = vst.msk [vmem:[#allocation3 + $0x20] sm:$0xff] %vm1744, %v1657
        %1750 = vst.msk [vmem:[#allocation3 + $0x28] sm:$0xff] %vm1744, %v1659
        %1751 = vst.msk [vmem:[#allocation3 + $0x30] sm:$0xff] %vm1744, %v1661
        %1752 = vst.msk [vmem:[#allocation3 + $0x38] sm:$0xff] %vm1744, %v1663
        %1753 = vst.msk [vmem:[#allocation3 + $0x40] sm:$0xff] %vm1744, %v1665
        %1754 = vst.msk [vmem:[#allocation3 + $0x48] sm:$0xff] %vm1744, %v1667
        %1755 = vst.msk [vmem:[#allocation3 + $0x50] sm:$0xff] %vm1744, %v1669
        %1756 = vst.msk [vmem:[#allocation3 + $0x58] sm:$0xff] %vm1744, %v1671
        %1757 = vst.msk [vmem:[#allocation3 + $0x60] sm:$0xff] %vm1744, %v1673
        %1758 = vst.msk [vmem:[#allocation3 + $0x68] sm:$0xff] %vm1744, %v1675
        %1759 = vst.msk [vmem:[#allocation3 + $0x70] sm:$0xff] %vm1744, %v1677
        %1760 = vst.msk [vmem:[#allocation3 + $0x78] sm:$0xff] %vm1744, %v1679
        %1761 = vst.msk [vmem:[#allocation3 + $0x80] sm:$0xff] %vm1744, %v1681
        %1762 = vst.msk [vmem:[#allocation3 + $0x88] sm:$0xff] %vm1744, %v1683
        %1763 = vst.msk [vmem:[#allocation3 + $0x90] sm:$0xff] %vm1744, %v1685
        %1764 = vst.msk [vmem:[#allocation3 + $0x98] sm:$0xff] %vm1744, %v1687
        %1765 = vst.msk [vmem:[#allocation3 + $0xa0] sm:$0xff] %vm1744, %v1689
        %1766 = vst.msk [vmem:[#allocation3 + $0xa8] sm:$0xff] %vm1744, %v1691
        %1767 = vst.msk [vmem:[#allocation3 + $0xb0] sm:$0xff] %vm1744, %v1693
        %1768 = vst.msk [vmem:[#allocation3 + $0xb8] sm:$0xff] %vm1744, %v1695
        %1769 = vst.msk [vmem:[#allocation3 + $0xc0] sm:$0xff] %vm1744, %v1697
        %1770 = vst.msk [vmem:[#allocation3 + $0xc8] sm:$0xff] %vm1744, %v1699
        %1771 = vst.msk [vmem:[#allocation3 + $0xd0] sm:$0xff] %vm1744, %v1701
        %1772 = vst.msk [vmem:[#allocation3 + $0xd8] sm:$0xff] %vm1744, %v1703
        %1773 = vst.msk [vmem:[#allocation3 + $0xe0] sm:$0xff] %vm1744, %v1705
        %1774 = vst.msk [vmem:[#allocation3 + $0xe8] sm:$0xff] %vm1744, %v1707
        %1775 = vst.msk [vmem:[#allocation3 + $0xf0] sm:$0xff] %vm1744, %v1709
        %1776 = vst.msk [vmem:[#allocation3 + $0xf8] sm:$0xff] %vm1744, %v1711
        %v1777 = vld [vmem:[%s1390 + $0x2] sm:$0xff]
        %v1778 = vld [vmem:[%s1390 + $0xa] sm:$0xff]
        %v1779 = vld [vmem:[%s1390 + $0x1a] sm:$0xff]
        %v1780 = vld [vmem:[%s1390 + $0x22] sm:$0xff]
        %v1781 = vld [vmem:[%s1390 + $0x32] sm:$0xff]
        %v1782 = vld [vmem:[%s1390 + $0x3a] sm:$0xff]
        %v1783 = vld [vmem:[%s1390 + $0x4a] sm:$0xff]
        %v1784 = vld [vmem:[%s1390 + $0x52] sm:$0xff]
        %v1785 = vld [vmem:[%s1390 + $0x62] sm:$0xff]
        %v1786 = vld [vmem:[%s1390 + $0x6a] sm:$0xff]
        %v1787 = vld [vmem:[%s1390 + $0x7a] sm:$0xff]
        %v1788 = vld [vmem:[%s1390 + $0x82] sm:$0xff]
        %v1789 = vld [vmem:[%s1390 + $0x92] sm:$0xff]
        %v1790 = vld [vmem:[%s1390 + $0x9a] sm:$0xff]
        %v1791 = vld [vmem:[%s1390 + $0xaa] sm:$0xff]
        %v1792 = vld [vmem:[%s1390 + $0xb2] sm:$0xff]
        %v1793 = vld [vmem:[%s1390 + $0xc2] sm:$0xff]
        %v1794 = vld [vmem:[%s1390 + $0xca] sm:$0xff]
        %v1795 = vld [vmem:[%s1390 + $0xda] sm:$0xff]
        %v1796 = vld [vmem:[%s1390 + $0xe2] sm:$0xff]
        %v1797 = vld [vmem:[%s1390 + $0xf2] sm:$0xff]
        %v1798 = vld [vmem:[%s1390 + $0xfa] sm:$0xff]
        %v1799 = vld [vmem:[%s1390 + $0x10a] sm:$0xff]
        %v1800 = vld [vmem:[%s1390 + $0x112] sm:$0xff]
        %v1801 = vld [vmem:[%s1390 + $0x122] sm:$0xff]
        %v1802 = vld [vmem:[%s1390 + $0x12a] sm:$0xff]
        %v1803 = vld [vmem:[%s1390 + $0x13a] sm:$0xff]
        %v1804 = vld [vmem:[%s1390 + $0x142] sm:$0xff]
        %v1805 = vld [vmem:[%s1390 + $0x152] sm:$0xff]
        %v1806 = vld [vmem:[%s1390 + $0x15a] sm:$0xff]
        %v1807 = vld [vmem:[%s1390 + $0x16a] sm:$0xff]
        %v1808 = vld [vmem:[%s1390 + $0x172] sm:$0xff]
        %1841 = vrot.lane.b32.xlu0 %v1777, 32
        %v1842 = vpop.permute.xlu0 %1841
        %1843 = vrot.lane.b32.xlu0 %v1778, 32
        %v1844 = vpop.permute.xlu0 %1843
        %1845 = vrot.lane.b32.xlu0 %v1779, 32
        %v1846 = vpop.permute.xlu0 %1845
        %1847 = vrot.lane.b32.xlu0 %v1780, 32
        %v1848 = vpop.permute.xlu0 %1847
        %1849 = vrot.lane.b32.xlu0 %v1781, 32
        %v1850 = vpop.permute.xlu0 %1849
        %1851 = vrot.lane.b32.xlu0 %v1782, 32
        %v1852 = vpop.permute.xlu0 %1851
        %1853 = vrot.lane.b32.xlu0 %v1783, 32
        %v1854 = vpop.permute.xlu0 %1853
        %1855 = vrot.lane.b32.xlu0 %v1784, 32
        %v1856 = vpop.permute.xlu0 %1855
        %1857 = vrot.lane.b32.xlu0 %v1785, 32
        %v1858 = vpop.permute.xlu0 %1857
        %1859 = vrot.lane.b32.xlu0 %v1786, 32
        %v1860 = vpop.permute.xlu0 %1859
        %1861 = vrot.lane.b32.xlu0 %v1787, 32
        %v1862 = vpop.permute.xlu0 %1861
        %1863 = vrot.lane.b32.xlu0 %v1788, 32
        %v1864 = vpop.permute.xlu0 %1863
        %1865 = vrot.lane.b32.xlu0 %v1789, 32
        %v1866 = vpop.permute.xlu0 %1865
        %1867 = vrot.lane.b32.xlu0 %v1790, 32
        %v1868 = vpop.permute.xlu0 %1867
        %1869 = vrot.lane.b32.xlu0 %v1791, 32
        %v1870 = vpop.permute.xlu0 %1869
        %1871 = vrot.lane.b32.xlu0 %v1792, 32
        %v1872 = vpop.permute.xlu0 %1871
        %1873 = vrot.lane.b32.xlu0 %v1793, 32
        %v1874 = vpop.permute.xlu0 %1873
        %1875 = vrot.lane.b32.xlu0 %v1794, 32
        %v1876 = vpop.permute.xlu0 %1875
        %1877 = vrot.lane.b32.xlu0 %v1795, 32
        %v1878 = vpop.permute.xlu0 %1877
        %1879 = vrot.lane.b32.xlu0 %v1796, 32
        %v1880 = vpop.permute.xlu0 %1879
        %1881 = vrot.lane.b32.xlu0 %v1797, 32
        %v1882 = vpop.permute.xlu0 %1881
        %1883 = vrot.lane.b32.xlu0 %v1798, 32
        %v1884 = vpop.permute.xlu0 %1883
        %1885 = vrot.lane.b32.xlu0 %v1799, 32
        %v1886 = vpop.permute.xlu0 %1885
        %1887 = vrot.lane.b32.xlu0 %v1800, 32
        %v1888 = vpop.permute.xlu0 %1887
        %1889 = vrot.lane.b32.xlu0 %v1801, 32
        %v1890 = vpop.permute.xlu0 %1889
        %1891 = vrot.lane.b32.xlu0 %v1802, 32
        %v1892 = vpop.permute.xlu0 %1891
        %1893 = vrot.lane.b32.xlu0 %v1803, 32
        %v1894 = vpop.permute.xlu0 %1893
        %1895 = vrot.lane.b32.xlu0 %v1804, 32
        %v1896 = vpop.permute.xlu0 %1895
        %1897 = vrot.lane.b32.xlu0 %v1805, 32
        %v1898 = vpop.permute.xlu0 %1897
        %1899 = vrot.lane.b32.xlu0 %v1806, 32
        %v1900 = vpop.permute.xlu0 %1899
        %1901 = vrot.lane.b32.xlu0 %v1807, 32
        %v1902 = vpop.permute.xlu0 %1901
        %1903 = vrot.lane.b32.xlu0 %v1808, 32
        %v1904 = vpop.permute.xlu0 %1903
        %vm1937 = vcmask 294144
        %1938 = vst.msk [vmem:[#allocation3] sm:$0xff] %vm1937, %v1842
        %1939 = vst.msk [vmem:[#allocation3 + $0x8] sm:$0xff] %vm1937, %v1844
        %1940 = vst.msk [vmem:[#allocation3 + $0x10] sm:$0xff] %vm1937, %v1846
        %1941 = vst.msk [vmem:[#allocation3 + $0x18] sm:$0xff] %vm1937, %v1848
        %1942 = vst.msk [vmem:[#allocation3 + $0x20] sm:$0xff] %vm1937, %v1850
        %1943 = vst.msk [vmem:[#allocation3 + $0x28] sm:$0xff] %vm1937, %v1852
        %1944 = vst.msk [vmem:[#allocation3 + $0x30] sm:$0xff] %vm1937, %v1854
        %1945 = vst.msk [vmem:[#allocation3 + $0x38] sm:$0xff] %vm1937, %v1856
        %1946 = vst.msk [vmem:[#allocation3 + $0x40] sm:$0xff] %vm1937, %v1858
        %1947 = vst.msk [vmem:[#allocation3 + $0x48] sm:$0xff] %vm1937, %v1860
        %1948 = vst.msk [vmem:[#allocation3 + $0x50] sm:$0xff] %vm1937, %v1862
        %1949 = vst.msk [vmem:[#allocation3 + $0x58] sm:$0xff] %vm1937, %v1864
        %1950 = vst.msk [vmem:[#allocation3 + $0x60] sm:$0xff] %vm1937, %v1866
        %1951 = vst.msk [vmem:[#allocation3 + $0x68] sm:$0xff] %vm1937, %v1868
        %1952 = vst.msk [vmem:[#allocation3 + $0x70] sm:$0xff] %vm1937, %v1870
        %1953 = vst.msk [vmem:[#allocation3 + $0x78] sm:$0xff] %vm1937, %v1872
        %1954 = vst.msk [vmem:[#allocation3 + $0x80] sm:$0xff] %vm1937, %v1874
        %1955 = vst.msk [vmem:[#allocation3 + $0x88] sm:$0xff] %vm1937, %v1876
        %1956 = vst.msk [vmem:[#allocation3 + $0x90] sm:$0xff] %vm1937, %v1878
        %1957 = vst.msk [vmem:[#allocation3 + $0x98] sm:$0xff] %vm1937, %v1880
        %1958 = vst.msk [vmem:[#allocation3 + $0xa0] sm:$0xff] %vm1937, %v1882
        %1959 = vst.msk [vmem:[#allocation3 + $0xa8] sm:$0xff] %vm1937, %v1884
        %1960 = vst.msk [vmem:[#allocation3 + $0xb0] sm:$0xff] %vm1937, %v1886
        %1961 = vst.msk [vmem:[#allocation3 + $0xb8] sm:$0xff] %vm1937, %v1888
        %1962 = vst.msk [vmem:[#allocation3 + $0xc0] sm:$0xff] %vm1937, %v1890
        %1963 = vst.msk [vmem:[#allocation3 + $0xc8] sm:$0xff] %vm1937, %v1892
        %1964 = vst.msk [vmem:[#allocation3 + $0xd0] sm:$0xff] %vm1937, %v1894
        %1965 = vst.msk [vmem:[#allocation3 + $0xd8] sm:$0xff] %vm1937, %v1896
        %1966 = vst.msk [vmem:[#allocation3 + $0xe0] sm:$0xff] %vm1937, %v1898
        %1967 = vst.msk [vmem:[#allocation3 + $0xe8] sm:$0xff] %vm1937, %v1900
        %1968 = vst.msk [vmem:[#allocation3 + $0xf0] sm:$0xff] %vm1937, %v1902
        %1969 = vst.msk [vmem:[#allocation3 + $0xf8] sm:$0xff] %vm1937, %v1904
        %v1970 = vld [vmem:[#allocation3] sm:$0xff]
        %v1971 = vld [vmem:[#allocation3 + $0x8] sm:$0xff]
        %v1972 = vld [vmem:[#allocation3 + $0x10] sm:$0xff]
        %v1973 = vld [vmem:[#allocation3 + $0x18] sm:$0xff]
        %v1974 = vld [vmem:[#allocation3 + $0x20] sm:$0xff]
        %v1975 = vld [vmem:[#allocation3 + $0x28] sm:$0xff]
        %v1976 = vld [vmem:[#allocation3 + $0x30] sm:$0xff]
        %v1977 = vld [vmem:[#allocation3 + $0x38] sm:$0xff]
        %v1978 = vld [vmem:[#allocation3 + $0x40] sm:$0xff]
        %v1979 = vld [vmem:[#allocation3 + $0x48] sm:$0xff]
        %v1980 = vld [vmem:[#allocation3 + $0x50] sm:$0xff]
        %v1981 = vld [vmem:[#allocation3 + $0x58] sm:$0xff]
        %v1982 = vld [vmem:[#allocation3 + $0x60] sm:$0xff]
        %v1983 = vld [vmem:[#allocation3 + $0x68] sm:$0xff]
        %v1984 = vld [vmem:[#allocation3 + $0x70] sm:$0xff]
        %v1985 = vld [vmem:[#allocation3 + $0x78] sm:$0xff]
        %v1986 = vld [vmem:[#allocation3 + $0x80] sm:$0xff]
        %v1987 = vld [vmem:[#allocation3 + $0x88] sm:$0xff]
        %v1988 = vld [vmem:[#allocation3 + $0x90] sm:$0xff]
        %v1989 = vld [vmem:[#allocation3 + $0x98] sm:$0xff]
        %v1990 = vld [vmem:[#allocation3 + $0xa0] sm:$0xff]
        %v1991 = vld [vmem:[#allocation3 + $0xa8] sm:$0xff]
        %v1992 = vld [vmem:[#allocation3 + $0xb0] sm:$0xff]
        %v1993 = vld [vmem:[#allocation3 + $0xb8] sm:$0xff]
        %v1994 = vld [vmem:[#allocation3 + $0xc0] sm:$0xff]
        %v1995 = vld [vmem:[#allocation3 + $0xc8] sm:$0xff]
        %v1996 = vld [vmem:[#allocation3 + $0xd0] sm:$0xff]
        %v1997 = vld [vmem:[#allocation3 + $0xd8] sm:$0xff]
        %v1998 = vld [vmem:[#allocation3 + $0xe0] sm:$0xff]
        %v1999 = vld [vmem:[#allocation3 + $0xe8] sm:$0xff]
        %v2000 = vld [vmem:[#allocation3 + $0xf0] sm:$0xff]
        %v2001 = vld [vmem:[#allocation3 + $0xf8] sm:$0xff]
        %v2002 = vpack.c.bf16 %v1971, %v1970
        %v2003 = vpack.c.bf16 %v1973, %v1972
        %v2004 = vpack.c.bf16 %v1975, %v1974
        %v2005 = vpack.c.bf16 %v1977, %v1976
        %v2006 = vpack.c.bf16 %v1979, %v1978
        %v2007 = vpack.c.bf16 %v1981, %v1980
        %v2008 = vpack.c.bf16 %v1983, %v1982
        %v2009 = vpack.c.bf16 %v1985, %v1984
        %v2010 = vpack.c.bf16 %v1987, %v1986
        %v2011 = vpack.c.bf16 %v1989, %v1988
        %v2012 = vpack.c.bf16 %v1991, %v1990
        %v2013 = vpack.c.bf16 %v1993, %v1992
        %v2014 = vpack.c.bf16 %v1995, %v1994
        %v2015 = vpack.c.bf16 %v1997, %v1996
        %v2016 = vpack.c.bf16 %v1999, %v1998
        %v2017 = vpack.c.bf16 %v2001, %v2000
        %v2018 = vld [vmem:[%s1] sm:$0xf]
        %v2019 = vld [vmem:[%s1 + $0x4] sm:$0xf]
        %v2020 = vld [vmem:[%s1 + $0x8] sm:$0xf]
        %v2021 = vld [vmem:[%s1 + $0xc] sm:$0xf]
        %v2022 = vld [vmem:[%s1 + $0x10] sm:$0x3]
        %v2023 = vld [vmem:[%s2] sm:$0x1]
        %v2025 = vlaneseq
        %v2026 = vshrl.u32 %v2025, 7
        %v2027 = vsub.s32 0, %v2026
        %v2028 = vrot.slane %v2023, %v2027
        %v2035 = vunpack.c.l.b16 %v2018
        %v2036 = vunpack.c.l.b16 %v2019
        %v2037 = vunpack.c.l.b16 %v2020
        %v2038 = vunpack.c.l.b16 %v2021
        %v2039 = vunpack.c.l.b16 %v2022
        %v2040 = vpack.c.b16 %v2036, %v2035
        %v2041 = vpack.c.b16 %v2038, %v2037
        %v2042 = vpack.c.b16 %v2039, %v2039
        %vm2045 = vcmask 293888
        %v2047 = vsel %vm2045, %v2002, 0
        %v2050 = vsel %vm2045, %v2003, 0
        %v2053 = vsel %vm2045, %v2004, 0
        %v2056 = vsel %vm2045, %v2005, 0
        %v2059 = vsel %vm2045, %v2006, 0
        %v2062 = vsel %vm2045, %v2007, 0
        %v2065 = vsel %vm2045, %v2008, 0
        %v2068 = vsel %vm2045, %v2009, 0
        %v2071 = vsel %vm2045, %v2010, 0
        %v2074 = vsel %vm2045, %v2011, 0
        %v2077 = vsel %vm2045, %v2012, 0
        %v2080 = vsel %vm2045, %v2013, 0
        %v2083 = vsel %vm2045, %v2014, 0
        %v2086 = vsel %vm2045, %v2015, 0
        %v2089 = vsel %vm2045, %v2016, 0
        %v2092 = vsel %vm2045, %v2017, 0
        %vm2094 = vcmask 1041408
        %v2096 = vsel %vm2094, %v2042, 0
        %2098 = vmatprep.subr.bf16.mxu0 0
        %2099 = vmatpush1.bf16.msra.mxu0 %v2040
        %2100 = vmatprep.subr.bf16.mxu0 0
        %2101 = vmatpush1.bf16.msra.mxu0 %v2041
        %2102 = vmatprep.subr.bf16.mxu0 0
        %2103 = vmatpush1.bf16.msra.mxu0 %v2096
        %2104 = vmatprep.subr.bf16.mxu0 0
        %2105 = vmatpush1.bf16.msra.mxu0 0
        %2106 = vmatprep.subr.bf16.mxu0 0
        %2107 = vmatpush1.bf16.msra.mxu0 0
        %2108 = vmatprep.subr.bf16.mxu0 0
        %2109 = vmatpush1.bf16.msra.mxu0 0
        %2110 = vmatprep.subr.bf16.mxu0 0
        %2111 = vmatpush1.bf16.msra.mxu0 0
        %2112 = vmatprep.subr.bf16.mxu0 0
        %2113 = vmatpush1.bf16.msra.mxu0 0
        %2114 = vmatprep.subr.bf16.mxu0 0
        %2115 = vmatpush1.bf16.msra.mxu0 0
        %2116 = vmatprep.subr.bf16.mxu0 0
        %2117 = vmatpush1.bf16.msra.mxu0 0
        %2118 = vmatprep.subr.bf16.mxu0 0
        %2119 = vmatpush1.bf16.msra.mxu0 0
        %2120 = vmatprep.subr.bf16.mxu0 0
        %2121 = vmatpush1.bf16.msra.mxu0 0
        %2122 = vmatprep.subr.bf16.mxu0 0
        %2123 = vmatpush1.bf16.msra.mxu0 0
        %2124 = vmatprep.subr.bf16.mxu0 0
        %2125 = vmatpush1.bf16.msra.mxu0 0
        %2126 = vmatprep.subr.bf16.mxu0 0
        %2127 = vmatpush1.bf16.msra.mxu0 0
        %2128 = vmatprep.subr.bf16.mxu0 0
        %2129 = vmatpush1.bf16.msra.mxu0 0
        %2130 = vmatprep.mubr.bf16.mxu0 0
        %2131 = vmatmul.mubr.bf16.gmra.mrb[0].mxu0 %v2047
        %v2132 = vpop.f32.mrb[0].mxu0
        %v2133 = vadd.f32 %v2028, %v2132
        %v2134 = vpop.f32.mrb[0].mxu0
        %v2135 = vpop.f32.mrb[0].mxu0
        %v2136 = vadd.f32 %v2028, %v2135
        %v2137 = vpop.f32.mrb[0].mxu0
        %2138 = vmatprep.mubr.bf16.mxu0 0
        %2139 = vmatmul.mubr.bf16.gmra.mrb[0].mxu0 %v2050
        %v2140 = vpop.f32.mrb[0].mxu0
        %v2141 = vadd.f32 %v2028, %v2140
        %v2142 = vpop.f32.mrb[0].mxu0
        %v2143 = vpop.f32.mrb[0].mxu0
        %v2144 = vadd.f32 %v2028, %v2143
        %v2145 = vpop.f32.mrb[0].mxu0
        %2146 = vmatprep.mubr.bf16.mxu0 0
        %2147 = vmatmul.mubr.bf16.gmra.mrb[0].mxu0 %v2053
        %v2148 = vpop.f32.mrb[0].mxu0
        %v2149 = vadd.f32 %v2028, %v2148
        %v2150 = vpop.f32.mrb[0].mxu0
        %v2151 = vpop.f32.mrb[0].mxu0
        %v2152 = vadd.f32 %v2028, %v2151
        %v2153 = vpop.f32.mrb[0].mxu0
        %2154 = vmatprep.mubr.bf16.mxu0 0
        %2155 = vmatmul.mubr.bf16.gmra.mrb[0].mxu0 %v2056
        %v2156 = vpop.f32.mrb[0].mxu0
        %v2157 = vadd.f32 %v2028, %v2156
        %v2158 = vpop.f32.mrb[0].mxu0
        %v2159 = vpop.f32.mrb[0].mxu0
        %v2160 = vadd.f32 %v2028, %v2159
        %v2161 = vpop.f32.mrb[0].mxu0
        %2162 = vmatprep.mubr.bf16.mxu0 0
        %2163 = vmatmul.mubr.bf16.gmra.mrb[0].mxu0 %v2059
        %v2164 = vpop.f32.mrb[0].mxu0
        %v2165 = vadd.f32 %v2028, %v2164
        %v2166 = vpop.f32.mrb[0].mxu0
        %v2167 = vpop.f32.mrb[0].mxu0
        %v2168 = vadd.f32 %v2028, %v2167
        %v2169 = vpop.f32.mrb[0].mxu0
        %2170 = vmatprep.mubr.bf16.mxu0 0
        %2171 = vmatmul.mubr.bf16.gmra.mrb[0].mxu0 %v2062
        %v2172 = vpop.f32.mrb[0].mxu0
        %v2173 = vadd.f32 %v2028, %v2172
        %v2174 = vpop.f32.mrb[0].mxu0
        %v2175 = vpop.f32.mrb[0].mxu0
        %v2176 = vadd.f32 %v2028, %v2175
        %v2177 = vpop.f32.mrb[0].mxu0
        %2178 = vmatprep.mubr.bf16.mxu0 0
        %2179 = vmatmul.mubr.bf16.gmra.mrb[0].mxu0 %v2065
        %v2180 = vpop.f32.mrb[0].mxu0
        %v2181 = vadd.f32 %v2028, %v2180
        %v2182 = vpop.f32.mrb[0].mxu0
        %v2183 = vpop.f32.mrb[0].mxu0
        %v2184 = vadd.f32 %v2028, %v2183
        %v2185 = vpop.f32.mrb[0].mxu0
        %2186 = vmatprep.mubr.bf16.mxu0 0
        %2187 = vmatmul.mubr.bf16.gmra.mrb[0].mxu0 %v2068
        %v2188 = vpop.f32.mrb[0].mxu0
        %v2189 = vadd.f32 %v2028, %v2188
        %v2190 = vpop.f32.mrb[0].mxu0
        %v2191 = vpop.f32.mrb[0].mxu0
        %v2192 = vadd.f32 %v2028, %v2191
        %v2193 = vpop.f32.mrb[0].mxu0
        %2194 = vmatprep.mubr.bf16.mxu0 0
        %2195 = vmatmul.mubr.bf16.gmra.mrb[0].mxu0 %v2071
        %v2196 = vpop.f32.mrb[0].mxu0
        %v2197 = vadd.f32 %v2028, %v2196
        %v2198 = vpop.f32.mrb[0].mxu0
        %v2199 = vpop.f32.mrb[0].mxu0
        %v2200 = vadd.f32 %v2028, %v2199
        %v2201 = vpop.f32.mrb[0].mxu0
        %2202 = vmatprep.mubr.bf16.mxu0 0
        %2203 = vmatmul.mubr.bf16.gmra.mrb[0].mxu0 %v2074
        %v2204 = vpop.f32.mrb[0].mxu0
        %v2205 = vadd.f32 %v2028, %v2204
        %v2206 = vpop.f32.mrb[0].mxu0
        %v2207 = vpop.f32.mrb[0].mxu0
        %v2208 = vadd.f32 %v2028, %v2207
        %v2209 = vpop.f32.mrb[0].mxu0
        %2210 = vmatprep.mubr.bf16.mxu0 0
        %2211 = vmatmul.mubr.bf16.gmra.mrb[0].mxu0 %v2077
        %v2212 = vpop.f32.mrb[0].mxu0
        %v2213 = vadd.f32 %v2028, %v2212
        %v2214 = vpop.f32.mrb[0].mxu0
        %v2215 = vpop.f32.mrb[0].mxu0
        %v2216 = vadd.f32 %v2028, %v2215
        %v2217 = vpop.f32.mrb[0].mxu0
        %2218 = vmatprep.mubr.bf16.mxu0 0
        %2219 = vmatmul.mubr.bf16.gmra.mrb[0].mxu0 %v2080
        %v2220 = vpop.f32.mrb[0].mxu0
        %v2221 = vadd.f32 %v2028, %v2220
        %v2222 = vpop.f32.mrb[0].mxu0
        %v2223 = vpop.f32.mrb[0].mxu0
        %v2224 = vadd.f32 %v2028, %v2223
        %v2225 = vpop.f32.mrb[0].mxu0
        %2226 = vmatprep.mubr.bf16.mxu0 0
        %2227 = vmatmul.mubr.bf16.gmra.mrb[0].mxu0 %v2083
        %v2228 = vpop.f32.mrb[0].mxu0
        %v2229 = vadd.f32 %v2028, %v2228
        %v2230 = vpop.f32.mrb[0].mxu0
        %v2231 = vpop.f32.mrb[0].mxu0
        %v2232 = vadd.f32 %v2028, %v2231
        %v2233 = vpop.f32.mrb[0].mxu0
        %2234 = vmatprep.mubr.bf16.mxu0 0
        %2235 = vmatmul.mubr.bf16.gmra.mrb[0].mxu0 %v2086
        %v2236 = vpop.f32.mrb[0].mxu0
        %v2237 = vadd.f32 %v2028, %v2236
        %v2238 = vpop.f32.mrb[0].mxu0
        %v2239 = vpop.f32.mrb[0].mxu0
        %v2240 = vadd.f32 %v2028, %v2239
        %v2241 = vpop.f32.mrb[0].mxu0
        %2242 = vmatprep.mubr.bf16.mxu0 0
        %2243 = vmatmul.mubr.bf16.gmra.mrb[0].mxu0 %v2089
        %v2244 = vpop.f32.mrb[0].mxu0
        %v2245 = vadd.f32 %v2028, %v2244
        %v2246 = vpop.f32.mrb[0].mxu0
        %v2247 = vpop.f32.mrb[0].mxu0
        %v2248 = vadd.f32 %v2028, %v2247
        %v2249 = vpop.f32.mrb[0].mxu0
        %2250 = vmatprep.mubr.bf16.mxu0 0
        %2251 = vmatmul.mubr.bf16.gmra.mrb[0].mxu0 %v2092
        %v2252 = vpop.f32.mrb[0].mxu0
        %v2253 = vadd.f32 %v2028, %v2252
        %v2254 = vpop.f32.mrb[0].mxu0
        %v2255 = vpop.f32.mrb[0].mxu0
        %v2256 = vadd.f32 %v2028, %v2255
        %v2257 = vpop.f32.mrb[0].mxu0
        %2258 = vdwg.mxu0
        %v2259 = vadd.f32 %v2133, %v2136
        %v2260 = vadd.f32 %v2259, %v2141
        %v2261 = vadd.f32 %v2260, %v2144
        %v2262 = vadd.f32 %v2261, %v2149
        %v2263 = vadd.f32 %v2262, %v2152
        %v2264 = vadd.f32 %v2263, %v2157
        %v2265 = vadd.f32 %v2264, %v2160
        %v2266 = vadd.f32 %v2265, %v2165
        %v2267 = vadd.f32 %v2266, %v2168
        %v2268 = vadd.f32 %v2267, %v2173
        %v2269 = vadd.f32 %v2268, %v2176
        %v2270 = vadd.f32 %v2269, %v2181
        %v2271 = vadd.f32 %v2270, %v2184
        %v2272 = vadd.f32 %v2271, %v2189
        %v2273 = vadd.f32 %v2272, %v2192
        %v2274 = vadd.f32 %v2273, %v2197
        %v2275 = vadd.f32 %v2274, %v2200
        %v2276 = vadd.f32 %v2275, %v2205
        %v2277 = vadd.f32 %v2276, %v2208
        %v2278 = vadd.f32 %v2277, %v2213
        %v2279 = vadd.f32 %v2278, %v2216
        %v2280 = vadd.f32 %v2279, %v2221
        %v2281 = vadd.f32 %v2280, %v2224
        %v2282 = vadd.f32 %v2281, %v2229
        %v2283 = vadd.f32 %v2282, %v2232
        %v2284 = vadd.f32 %v2283, %v2237
        %v2285 = vadd.f32 %v2284, %v2240
        %v2286 = vadd.f32 %v2285, %v2245
        %v2287 = vadd.f32 %v2286, %v2248
        %v2288 = vadd.f32 %v2287, %v2253
        %v2289 = vadd.f32 %v2288, %v2256
        %v2290 = vrot.slane %v2289, 4
        %v2291 = vadd.f32 %v2289, %v2290
        %v2292 = vrot.slane %v2291, 2
        %v2293 = vadd.f32 %v2291, %v2292
        %v2294 = vrot.slane %v2293, 1
        %v2295 = vadd.f32 %v2293, %v2294
        %2296 = vst [vmem:[%s227] sm:$0x1] %v2295
        %v2297 = vmul.f32 %v2133, %v2133
        %v2298 = vmul.f32 %v2136, %v2136
        %v2299 = vmul.f32 %v2141, %v2141
        %v2300 = vmul.f32 %v2144, %v2144
        %v2301 = vmul.f32 %v2149, %v2149
        %v2302 = vmul.f32 %v2152, %v2152
        %v2303 = vmul.f32 %v2157, %v2157
        %v2304 = vmul.f32 %v2160, %v2160
        %v2305 = vmul.f32 %v2165, %v2165
        %v2306 = vmul.f32 %v2168, %v2168
        %v2307 = vmul.f32 %v2173, %v2173
        %v2308 = vmul.f32 %v2176, %v2176
        %v2309 = vmul.f32 %v2181, %v2181
        %v2310 = vmul.f32 %v2184, %v2184
        %v2311 = vmul.f32 %v2189, %v2189
        %v2312 = vmul.f32 %v2192, %v2192
        %v2313 = vmul.f32 %v2197, %v2197
        %v2314 = vmul.f32 %v2200, %v2200
        %v2315 = vmul.f32 %v2205, %v2205
        %v2316 = vmul.f32 %v2208, %v2208
        %v2317 = vmul.f32 %v2213, %v2213
        %v2318 = vmul.f32 %v2216, %v2216
        %v2319 = vmul.f32 %v2221, %v2221
        %v2320 = vmul.f32 %v2224, %v2224
        %v2321 = vmul.f32 %v2229, %v2229
        %v2322 = vmul.f32 %v2232, %v2232
        %v2323 = vmul.f32 %v2237, %v2237
        %v2324 = vmul.f32 %v2240, %v2240
        %v2325 = vmul.f32 %v2245, %v2245
        %v2326 = vmul.f32 %v2248, %v2248
        %v2327 = vmul.f32 %v2253, %v2253
        %v2328 = vmul.f32 %v2256, %v2256
        %v2329 = vadd.f32 %v2297, %v2298
        %v2330 = vadd.f32 %v2329, %v2299
        %v2331 = vadd.f32 %v2330, %v2300
        %v2332 = vadd.f32 %v2331, %v2301
        %v2333 = vadd.f32 %v2332, %v2302
        %v2334 = vadd.f32 %v2333, %v2303
        %v2335 = vadd.f32 %v2334, %v2304
        %v2336 = vadd.f32 %v2335, %v2305
        %v2337 = vadd.f32 %v2336, %v2306
        %v2338 = vadd.f32 %v2337, %v2307
        %v2339 = vadd.f32 %v2338, %v2308
        %v2340 = vadd.f32 %v2339, %v2309
        %v2341 = vadd.f32 %v2340, %v2310
        %v2342 = vadd.f32 %v2341, %v2311
        %v2343 = vadd.f32 %v2342, %v2312
        %v2344 = vadd.f32 %v2343, %v2313
        %v2345 = vadd.f32 %v2344, %v2314
        %v2346 = vadd.f32 %v2345, %v2315
        %v2347 = vadd.f32 %v2346, %v2316
        %v2348 = vadd.f32 %v2347, %v2317
        %v2349 = vadd.f32 %v2348, %v2318
        %v2350 = vadd.f32 %v2349, %v2319
        %v2351 = vadd.f32 %v2350, %v2320
        %v2352 = vadd.f32 %v2351, %v2321
        %v2353 = vadd.f32 %v2352, %v2322
        %v2354 = vadd.f32 %v2353, %v2323
        %v2355 = vadd.f32 %v2354, %v2324
        %v2356 = vadd.f32 %v2355, %v2325
        %v2357 = vadd.f32 %v2356, %v2326
        %v2358 = vadd.f32 %v2357, %v2327
        %v2359 = vadd.f32 %v2358, %v2328
        %v2360 = vrot.slane %v2359, 4
        %v2361 = vadd.f32 %v2359, %v2360
        %v2362 = vrot.slane %v2361, 2
        %v2363 = vadd.f32 %v2361, %v2362
        %v2364 = vrot.slane %v2363, 1
        %v2365 = vadd.f32 %v2363, %v2364
        %2366 = vst [vmem:[%s233] sm:$0x1] %v2365
        %2367 = vst [vmem:[%s221] sm:$0xff] %v2133
        %2368 = vst [vmem:[%s221 + $0x8] sm:$0xff] %v2136
        %2369 = vst [vmem:[%s221 + $0x10] sm:$0xff] %v2141
        %2370 = vst [vmem:[%s221 + $0x18] sm:$0xff] %v2144
        %2371 = vst [vmem:[%s221 + $0x20] sm:$0xff] %v2149
        %2372 = vst [vmem:[%s221 + $0x28] sm:$0xff] %v2152
        %2373 = vst [vmem:[%s221 + $0x30] sm:$0xff] %v2157
        %2374 = vst [vmem:[%s221 + $0x38] sm:$0xff] %v2160
        %2375 = vst [vmem:[%s221 + $0x40] sm:$0xff] %v2165
        %2376 = vst [vmem:[%s221 + $0x48] sm:$0xff] %v2168
        %2377 = vst [vmem:[%s221 + $0x50] sm:$0xff] %v2173
        %2378 = vst [vmem:[%s221 + $0x58] sm:$0xff] %v2176
        %2379 = vst [vmem:[%s221 + $0x60] sm:$0xff] %v2181
        %2380 = vst [vmem:[%s221 + $0x68] sm:$0xff] %v2184
        %2381 = vst [vmem:[%s221 + $0x70] sm:$0xff] %v2189
        %2382 = vst [vmem:[%s221 + $0x78] sm:$0xff] %v2192
        %2383 = vst [vmem:[%s221 + $0x80] sm:$0xff] %v2197
        %2384 = vst [vmem:[%s221 + $0x88] sm:$0xff] %v2200
        %2385 = vst [vmem:[%s221 + $0x90] sm:$0xff] %v2205
        %2386 = vst [vmem:[%s221 + $0x98] sm:$0xff] %v2208
        %2387 = vst [vmem:[%s221 + $0xa0] sm:$0xff] %v2213
        %2388 = vst [vmem:[%s221 + $0xa8] sm:$0xff] %v2216
        %2389 = vst [vmem:[%s221 + $0xb0] sm:$0xff] %v2221
        %2390 = vst [vmem:[%s221 + $0xb8] sm:$0xff] %v2224
        %2391 = vst [vmem:[%s221 + $0xc0] sm:$0xff] %v2229
        %2392 = vst [vmem:[%s221 + $0xc8] sm:$0xff] %v2232
        %2393 = vst [vmem:[%s221 + $0xd0] sm:$0xff] %v2237
        %2394 = vst [vmem:[%s221 + $0xd8] sm:$0xff] %v2240
        %2395 = vst [vmem:[%s221 + $0xe0] sm:$0xff] %v2245
        %2396 = vst [vmem:[%s221 + $0xe8] sm:$0xff] %v2248
        %2397 = vst [vmem:[%s221 + $0xf0] sm:$0xff] %v2253
        %2398 = vst [vmem:[%s221 + $0xf8] sm:$0xff] %v2256
        %s2399 = sand.u32 %s99, 1
        %s2400 = scalar_lea.sflag [#allocation5], %s2399
        %s2401 = sand.u32 %s99, 1
        %s2402 = smul.addr %s2401, 256
        %s2403 = scalar_lea.vmem [#allocation4], %s2402
        %s2404 = sand.u32 %s23, 1
        %s2405 = scalar_lea.sflag [#allocation7], %s2404
        %s2406 = sand.u32 %s125, 1
        %s2407 = scalar_lea.vmem [#allocation6], %s2406
        %s2408 = sand.u32 %s23, 1
        %s2409 = scalar_lea.sflag [#allocation7], %s2408
        %s2410 = sand.u32 %s151, 1
        %s2411 = scalar_lea.vmem [#allocation8], %s2410
        // Predicated region
        $region33: #{tpu_custom_call.1} parent=31 // pred_check
          %p2412 = pneg %p109
        $region34: #{tpu_custom_call.1} parent=31 // pred_check_branch
          %2414 = sbr.rel (%p2412) target = $region36
        $region35: #{tpu_custom_call.1} parent=31 // pred_region
          %s2416 = ssub.s32 4096, 4096
          %2417 = vsyncadd %s2400, %s2416
          %s2418 = smul.addr %s23, 32
          %s2419 = smul.addr %s2418, 128
          %s2420 = scalar_lea.hbm %s3, %s2419
          %s2421 = sshll.u32 %s2403, 4
          %s2422 = int_to_ptr.vmem [resolvable:$true] %s2421
          %2427 = dma.vmem_to_hbm [thread:$0]  %s2422, 4096, %s2420, %s2400, 128, 128, 8
        $region36: #{tpu_custom_call.1} parent=31 // pred_fallthru
          _
        // Predicated region
        $region37: #{tpu_custom_call.1} parent=31 // pred_check
          %p2428 = pneg %p135
        $region38: #{tpu_custom_call.1} parent=31 // pred_check_branch
          %2430 = sbr.rel (%p2428) target = $region40
        $region39: #{tpu_custom_call.1} parent=31 // pred_region
          %s2432 = ssub.s32 16, 16
          %2433 = vsyncadd %s2405, %s2432
          %s2434 = smul.addr %s23, 16
          %s2435 = scalar_lea.hbm %s4, %s2434
          %s2437 = sshll.u32 %s2407, 4
          %s2438 = int_to_ptr.vmem [resolvable:$true] %s2437
          %2440 = dma.vmem_to_hbm [thread:$0]  %s2438, 16, %s2435, %s2405
        $region40: #{tpu_custom_call.1} parent=31 // pred_fallthru
          _
        // Predicated region
        $region41: #{tpu_custom_call.1} parent=31 // pred_check
          %p2441 = pneg %p161
        $region42: #{tpu_custom_call.1} parent=31 // pred_check_branch
          %2443 = sbr.rel (%p2441) target = $region44
        $region43: #{tpu_custom_call.1} parent=31 // pred_region
          %s2445 = ssub.s32 16, 16
          %2446 = vsyncadd %s2409, %s2445
          %s2447 = smul.addr %s23, 16
          %s2448 = scalar_lea.hbm %s5, %s2447
          %s2450 = sshll.u32 %s2411, 4
          %s2451 = int_to_ptr.vmem [resolvable:$true] %s2450
          %2453 = dma.vmem_to_hbm [thread:$0]  %s2451, 16, %s2448, %s2409
        $region44: #{tpu_custom_call.1} parent=31 // pred_fallthru
          _
      $region32: #{tpu_custom_call.1} parent=5 // pred_fallthru
        _
      %p2454 = scmp.le.s32.totalorder 2, %s18
      // Predicated region
      $region45: #{tpu_custom_call.1} parent=5 // pred_check
        %p2455 = pneg %p2454
      $region46: #{tpu_custom_call.1} parent=5 // pred_check_branch
        %2457 = sbr.rel (%p2455) target = $region48
      $region47: #{tpu_custom_call.1} parent=5 // pred_region
        %s2458 = ssub.s32 %s18, 2
        // Predicated region
        $region49: #{tpu_custom_call.1} parent=47 // pred_check
          %p2459 = pneg %p115
        $region50: #{tpu_custom_call.1} parent=47 // pred_check_branch
          %2461 = sbr.rel (%p2459) target = $region52
        $region51: #{tpu_custom_call.1} parent=47 // pred_region
          %s2462 = sand.u32 %s100, 1
          %s2463 = scalar_lea.sflag [#allocation5], %s2462
          %s2464 = sand.u32 %s100, 1
          %s2465 = smul.addr %s2464, 256
          %s2466 = scalar_lea.vmem [#allocation4], %s2465
          %2467 = dma.done %s2463, 4096
        $region52: #{tpu_custom_call.1} parent=47 // pred_fallthru
          _
        // Predicated region
        $region53: #{tpu_custom_call.1} parent=47 // pred_check
          %p2468 = pneg %p141
        $region54: #{tpu_custom_call.1} parent=47 // pred_check_branch
          %2470 = sbr.rel (%p2468) target = $region56
        $region55: #{tpu_custom_call.1} parent=47 // pred_region
          %s2471 = sand.u32 %s24, 1
          %s2472 = scalar_lea.sflag [#allocation7], %s2471
          %s2473 = sand.u32 %s126, 1
          %s2474 = scalar_lea.vmem [#allocation6], %s2473
          %2475 = dma.done %s2472, 16
        $region56: #{tpu_custom_call.1} parent=47 // pred_fallthru
          _
        // Predicated region
        $region57: #{tpu_custom_call.1} parent=47 // pred_check
          %p2476 = pneg %p167
        $region58: #{tpu_custom_call.1} parent=47 // pred_check_branch
          %2478 = sbr.rel (%p2476) target = $region60
        $region59: #{tpu_custom_call.1} parent=47 // pred_region
          %s2479 = sand.u32 %s24, 1
          %s2480 = scalar_lea.sflag [#allocation7], %s2479
          %s2481 = sand.u32 %s152, 1
          %s2482 = scalar_lea.vmem [#allocation8], %s2481
          %2483 = dma.done %s2480, 16
        $region60: #{tpu_custom_call.1} parent=47 // pred_fallthru
          _
      $region48: #{tpu_custom_call.1} parent=5 // pred_fallthru
        _
    $region6: #{tpu_custom_call.1} parent=1 // loop_footer
      %s22 = sadd.s32 1, %s18
    $region7: #{tpu_custom_call.1} parent=1 // loop_footer_branch
      %17 = sbr.rel target = $region3
    $region8: #{tpu_custom_call.1} parent=1 // loop_exit
      _
    %2484 = vsyncpa [#allocation5], 1
    %s2485 = scalar_lea.sflag [#allocation5], 1
    %2486 = vsyncpa %s2485, 1
    %2487 = vsyncpa [#allocation7], 1
    %s2488 = scalar_lea.sflag [#allocation7], 1
    %2489 = vsyncpa %s2488, 1

</llo_original>
